<compile_context>
chip_gen: v7x
topology: tpu7x:2x2x1
jax: 0.10.0
libtpu: 0.0.40
codegen_flags: <defaults>
</compile_context>

<pallas_src>
import functools

import jax
import jax.numpy as jnp
from jax.experimental import pallas as pl
from jax.experimental.pallas import tpu as pltpu


def _round_up(x, m):
    return (x + m - 1) // m * m


def gnn_kernel(x_ref, w_in_ref, b_in_ref, w_ref, gamma_ref, beta_ref, o_ref,
               *, num_layers: int, num_comp: int, hidden: int, eps: float):
    C, H = num_comp, hidden
    TG = x_ref.shape[-1]

    # ---- input projection + ReLU: kron(I, w_in^T) @ x_flat, f32 on MXU -------
    h = jnp.maximum(
        jnp.dot(w_in_ref[...], x_ref[...], preferred_element_type=jnp.float32)
        + b_in_ref[...],                                     # (C*H, 1) lane-bcast
        0.0)                                                 # (C*H, TG) f32

    # ---- GNN layers (statically unrolled) -------------------------------------
    for l in range(num_layers):
        # One fused matmul per layer: W_l = kron(I, U^T) + kron(sigmoid(adj), V^T)
        # bf16 operands, f32 accumulation on the MXU.
        upd = jnp.dot(w_ref[l], h.astype(jnp.bfloat16),
                      preferred_element_type=jnp.float32)    # (C*H, TG) f32

        # LayerNorm over H: per-component sublane-dim reduction (f32 math).
        u3 = upd.reshape(C, H, TG)
        mu = jnp.mean(u3, axis=1, keepdims=True)             # (C, 1, TG)
        var = jnp.mean(jnp.square(u3 - mu), axis=1, keepdims=True)
        n3 = (u3 - mu) * jax.lax.rsqrt(var + eps)
        normed = n3.reshape(C * H, TG) * gamma_ref[l] + beta_ref[l]

        # residual + ReLU
        h = h + jnp.maximum(normed, 0.0)

    o_ref[...] = h


def service_component_gnn(x, params, num_layers, *, block_rows=2048):
    """x: (B, S, C, Din) f32 -> (B, S, C, H) f32.

    block_rows = B*S columns (lanes) per grid step.  Rounded to a multiple of
    128 and capped at ~ceil(G/2) so the grid has >=2 steps whenever G > 128
    (lets v7x's two TensorCores split the "parallel" axis).  Footprint at the
    default 2048 is ~10 MiB, far below every generation's VMEM.
    """
    B, S, C, Din = x.shape
    H = params["w_in"].shape[1]
    L = num_layers
    G = B * S

    # Lane tile: multiple of 128, >=2 grid steps for non-trivial G.
    TG = max(128, min(_round_up(block_rows, 128),
                      _round_up((G + 1) // 2, 128)))
    G_pad = _round_up(G, TG)

    # Rows-in-lanes layout: (B,S,C,Din) -> (C*Din, G), pad lanes with zeros.
    xf = jnp.transpose(x, (2, 3, 0, 1)).reshape(C * Din, G)
    if G_pad != G:
        xf = jnp.pad(xf, ((0, 0), (0, G_pad - G)))

    # Fused weights (host-side, one-time):
    #   input proj : kron(I_C, w_in^T)                        (C*H, C*Din) f32
    #   layer l    : kron(I_C, U_l^T) + kron(sigmoid(adj), V_l^T)  (C*H, C*H) bf16
    eye_c = jnp.eye(C, dtype=jnp.float32)
    ew = jax.nn.sigmoid(params["adj"])                         # (C, C)
    w_in_k = jnp.kron(eye_c, params["w_in"].T)                 # (C*H, C*Din)
    b_in_k = jnp.tile(params["b_in"], (C, 1)).reshape(C * H, 1)
    w_layers = jnp.stack(
        [jnp.kron(eye_c, params["U"][l].T) + jnp.kron(ew, params["V"][l].T)
         for l in range(L)], axis=0).astype(jnp.bfloat16)      # (L, C*H, C*H)
    gamma_k = jnp.tile(params["gamma"][:, None, :], (1, C, 1)).reshape(L, C * H, 1)
    beta_k = jnp.tile(params["beta"][:, None, :], (1, C, 1)).reshape(L, C * H, 1)

    kernel = functools.partial(gnn_kernel, num_layers=L, num_comp=C,
                               hidden=H, eps=1e-5)
    grid = (G_pad // TG,)

    in_specs = [
        pl.BlockSpec((C * Din, TG), lambda i: (0, i)),     # x tile (pipelined)
        pl.BlockSpec((C * H, C * Din), lambda i: (0, 0)),  # kron input-proj weight
        pl.BlockSpec((C * H, 1), lambda i: (0, 0)),        # bias column
        pl.BlockSpec((L, C * H, C * H), lambda i: (0, 0, 0)),  # fused layer weights
        pl.BlockSpec((L, C * H, 1), lambda i: (0, 0, 0)),  # gamma columns
        pl.BlockSpec((L, C * H, 1), lambda i: (0, 0, 0)),  # beta columns
    ]
    out_specs = pl.BlockSpec((C * H, TG), lambda i: (0, i))

    cost = pl.CostEstimate(
        flops=int(G_pad * (2 * C * H * C * Din
                           + L * (2 * C * H * C * H      # fused layer matmul
                                  + 10 * C * H))),        # LN / residual VPU work
        transcendentals=int(L * C * G_pad),               # rsqrt per comp per col
        bytes_accessed=int(4 * xf.size + 4 * C * H * G_pad
                           + 2 * w_layers.size
                           + 4 * (w_in_k.size + b_in_k.size
                                  + gamma_k.size + beta_k.size)),
    )

    out = pl.pallas_call(
        kernel,
        out_shape=jax.ShapeDtypeStruct((C * H, G_pad), jnp.float32),
        grid=grid,
        in_specs=in_specs,
        out_specs=out_specs,
        compiler_params=pltpu.CompilerParams(
            dimension_semantics=("parallel",),            # megacore shard on v7x
            vmem_limit_bytes=32 * 1024 * 1024,
        ),
        cost_estimate=cost,
    )(xf, w_in_k, b_in_k, w_layers, gamma_k, beta_k)

    out = out[:, :G]                                       # drop padded lanes
    return jnp.transpose(out.reshape(C, H, B, S), (2, 3, 0, 1))


def init_params(key, input_dim, hidden_dim, num_layers):
    """Deterministic synthetic parameters (uniform +-1/sqrt(fan_in), LN = (1, 0))."""
    ks = jax.random.split(key, 3)
    lim_in = 1.0 / jnp.sqrt(input_dim)
    lim_h = 1.0 / jnp.sqrt(hidden_dim)
    # weights stored pre-transposed: (in, out)
    w_in = jax.random.uniform(ks[0], (input_dim, hidden_dim), jnp.float32,
                              -lim_in, lim_in)
    b_in = jax.random.uniform(ks[1], (1, hidden_dim), jnp.float32,
                              -lim_in, lim_in)
    uv = jax.random.uniform(ks[2], (2, num_layers, hidden_dim, hidden_dim),
                            jnp.float32, -lim_h, lim_h)
    # Round U/V to bf16-representable values so the kernel's bf16 MXU weights
    # stay close to the f32 reference (remaining diffs: bf16 activation casts
    # and the bf16 rounding of sigmoid(adj)*V inside the fused weight).
    uv = uv.astype(jnp.bfloat16).astype(jnp.float32)
    adj = jnp.array([[0, 1, 0, 1, 0, 1],
                     [0, 0, 0, 1, 1, 1],
                     [0, 0, 0, 0, 1, 1],
                     [0, 0, 0, 0, 1, 1],
                     [0, 0, 0, 0, 0, 1],
                     [0, 0, 0, 0, 0, 0]], dtype=jnp.float32)
    return {
        "w_in": w_in,
        "b_in": b_in,
        "adj": adj,
        "U": uv[0],
        "V": uv[1],
        "gamma": jnp.ones((num_layers, hidden_dim), jnp.float32),
        "beta": jnp.zeros((num_layers, hidden_dim), jnp.float32),
    }


def reference_forward(x, params, num_layers, eps=1e-5):
    """Pure-JAX f32 reference mirroring the PyTorch forward."""
    h = jax.nn.relu(jnp.einsum("bscd,dh->bsch", x, params["w_in"])
                    + params["b_in"][0])
    ew = jax.nn.sigmoid(params["adj"])  # (6, 6)
    for l in range(num_layers):
        u_term = jnp.einsum("bsch,hk->bsck", h, params["U"][l])
        v_h = jnp.einsum("bsch,hk->bsck", h, params["V"][l])
        msgs = jnp.einsum("ce,bseh->bsch", ew, v_h)
        upd = u_term + msgs
        mu = jnp.mean(upd, axis=-1, keepdims=True)
        var = jnp.mean((upd - mu) ** 2, axis=-1, keepdims=True)
        upd = (upd - mu) / jnp.sqrt(var + eps)
        upd = upd * params["gamma"][l] + params["beta"][l]
        h = h + jax.nn.relu(upd)
    return h


if __name__ == "__main__":
    B, S, C = 2, 3, 6          # num_components is fixed to 6 by the adjacency matrix
    input_dim, hidden_dim, num_layers = 8, 32, 2

    key = jax.random.PRNGKey(0)
    k_p, k_x, k_x2 = jax.random.split(key, 3)
    params = init_params(k_p, input_dim, hidden_dim, num_layers)

    x = jax.random.normal(k_x, (B, S, C, input_dim), jnp.float32)
    out = jax.block_until_ready(service_component_gnn(x, params, num_layers))
    ref = reference_forward(x, params, num_layers)
    assert out.shape == (B, S, C, hidden_dim)
    assert jnp.allclose(out, ref, rtol=3e-2, atol=3e-2), \
        float(jnp.max(jnp.abs(out - ref)))

    # Exercise the multi-step grid and the non-divisible-G (lane padding) path.
    x2 = jax.random.normal(k_x2, (3, 100, C, input_dim), jnp.float32)
    out2 = jax.block_until_ready(
        service_component_gnn(x2, params, num_layers, block_rows=128))
    ref2 = reference_forward(x2, params, num_layers)
    assert out2.shape == (3, 100, C, hidden_dim)
    assert jnp.allclose(out2, ref2, rtol=3e-2, atol=3e-2), \
        float(jnp.max(jnp.abs(out2 - ref2)))

    print("KERNEL_OK")
</pallas_src>

<mosaic_0001>
module attributes {stable_mosaic.version = 11 : i64} {
  func.func @gnn_kernel(%arg0: i32, %arg1: memref<48x128xf32, #tpu.memory_space<vmem>>, %arg2: memref<192x48xf32, #tpu.memory_space<vmem>>, %arg3: memref<192x1xf32, #tpu.memory_space<vmem>>, %arg4: memref<2x192x192xbf16, #tpu.memory_space<vmem>>, %arg5: memref<2x192x1xf32, #tpu.memory_space<vmem>>, %arg6: memref<2x192x1xf32, #tpu.memory_space<vmem>>, %arg7: memref<192x128xf32, #tpu.memory_space<vmem>>) attributes {dimension_semantics = [#tpu.dimension_semantics<parallel>], iteration_bounds = array<i64: 1>, scalar_prefetch = 0 : i64, scratch_operands = 0 : i64, tpu.core_type = #tpu.core_type<tc>, window_params = [{transform_indices = @transform_0, window_bounds = array<i64: 48, 128>}, {pipeline_mode = #tpu.pipeline_mode<synchronous>, transform_indices = @transform_1, window_bounds = array<i64: 192, 48>}, {pipeline_mode = #tpu.pipeline_mode<synchronous>, transform_indices = @transform_2, window_bounds = array<i64: 192, 1>}, {pipeline_mode = #tpu.pipeline_mode<synchronous>, transform_indices = @transform_3, window_bounds = array<i64: 2, 192, 192>}, {pipeline_mode = #tpu.pipeline_mode<synchronous>, transform_indices = @transform_4, window_bounds = array<i64: 2, 192, 1>}, {pipeline_mode = #tpu.pipeline_mode<synchronous>, transform_indices = @transform_5, window_bounds = array<i64: 2, 192, 1>}, {transform_indices = @transform_6, window_bounds = array<i64: 192, 128>}]} {
    %c0 = arith.constant 0 : index
    %c0_0 = arith.constant 0 : index
    %0 = vector.load %arg2[%c0, %c0_0] : memref<192x48xf32, #tpu.memory_space<vmem>>, vector<192x48xf32>
    %c0_1 = arith.constant 0 : index
    %c0_2 = arith.constant 0 : index
    %1 = vector.load %arg1[%c0_1, %c0_2] : memref<48x128xf32, #tpu.memory_space<vmem>>, vector<48x128xf32>
    %cst = arith.constant dense<0.000000e+00> : vector<192x128xf32>
    %2 = tpu.matmul %0, %1, %cst {dimension_numbers = #tpu.dot_dimension_numbers<[1], [0], [0], [1], [0, 0, 1, 1], [], []>} : vector<192x48xf32>, vector<48x128xf32>, vector<192x128xf32> -> vector<192x128xf32>
    %c0_3 = arith.constant 0 : index
    %c0_4 = arith.constant 0 : index
    %3 = vector.load %arg3[%c0_3, %c0_4] : memref<192x1xf32, #tpu.memory_space<vmem>>, vector<192x1xf32>
    %4 = vector.broadcast %3 : vector<192x1xf32> to vector<192x128xf32>
    %5 = arith.addf %2, %4 : vector<192x128xf32>
    %cst_5 = arith.constant 0.000000e+00 : f32
    %6 = vector.broadcast %cst_5 : f32 to vector<192x128xf32>
    %7 = arith.maximumf %5, %6 : vector<192x128xf32>
    %c0_6 = arith.constant 0 : index
    %c0_7 = arith.constant 0 : index
    %c0_8 = arith.constant 0 : index
    %8 = vector.load %arg4[%c0_6, %c0_7, %c0_8] : memref<2x192x192xbf16, #tpu.memory_space<vmem>>, vector<1x192x192xbf16>
    %9 = vector.shape_cast %8 : vector<1x192x192xbf16> to vector<192x192xbf16>
    %10 = arith.truncf %7 : vector<192x128xf32> to vector<192x128xbf16>
    %cst_9 = arith.constant dense<0.000000e+00> : vector<192x128xf32>
    %11 = tpu.matmul %9, %10, %cst_9 {dimension_numbers = #tpu.dot_dimension_numbers<[1], [0], [0], [1], [0, 0, 1, 1], [], []>} : vector<192x192xbf16>, vector<192x128xbf16>, vector<192x128xf32> -> vector<192x128xf32>
    %12 = vector.shape_cast %11 : vector<192x128xf32> to vector<6x32x128xf32>
    %cst_10 = arith.constant dense<0.000000e+00> : vector<6x128xf32>
    %13 = vector.multi_reduction <add>, %12, %cst_10 [1] : vector<6x32x128xf32> to vector<6x128xf32>
    %14 = vector.shape_cast %13 : vector<6x128xf32> to vector<6x1x128xf32>
    %cst_11 = arith.constant 3.200000e+01 : f32
    %15 = vector.broadcast %cst_11 : f32 to vector<6x1x128xf32>
    %16 = arith.divf %14, %15 : vector<6x1x128xf32>
    %17 = vector.broadcast %16 : vector<6x1x128xf32> to vector<6x32x128xf32>
    %18 = arith.subf %12, %17 : vector<6x32x128xf32>
    %19 = arith.mulf %18, %18 : vector<6x32x128xf32>
    %cst_12 = arith.constant dense<0.000000e+00> : vector<6x128xf32>
    %20 = vector.multi_reduction <add>, %19, %cst_12 [1] : vector<6x32x128xf32> to vector<6x128xf32>
    %21 = vector.shape_cast %20 : vector<6x128xf32> to vector<6x1x128xf32>
    %cst_13 = arith.constant 3.200000e+01 : f32
    %22 = vector.broadcast %cst_13 : f32 to vector<6x1x128xf32>
    %23 = arith.divf %21, %22 : vector<6x1x128xf32>
    %24 = vector.broadcast %16 : vector<6x1x128xf32> to vector<6x32x128xf32>
    %25 = arith.subf %12, %24 : vector<6x32x128xf32>
    %cst_14 = arith.constant 9.99999974E-6 : f32
    %26 = vector.broadcast %cst_14 : f32 to vector<6x1x128xf32>
    %27 = arith.addf %23, %26 : vector<6x1x128xf32>
    %28 = math.rsqrt %27 : vector<6x1x128xf32>
    %29 = vector.broadcast %28 : vector<6x1x128xf32> to vector<6x32x128xf32>
    %30 = arith.mulf %25, %29 : vector<6x32x128xf32>
    %31 = vector.shape_cast %30 : vector<6x32x128xf32> to vector<192x128xf32>
    %c0_15 = arith.constant 0 : index
    %c0_16 = arith.constant 0 : index
    %c0_17 = arith.constant 0 : index
    %32 = vector.load %arg5[%c0_15, %c0_16, %c0_17] : memref<2x192x1xf32, #tpu.memory_space<vmem>>, vector<1x192x1xf32>
    %33 = vector.shape_cast %32 : vector<1x192x1xf32> to vector<192x1xf32>
    %34 = vector.broadcast %33 : vector<192x1xf32> to vector<192x128xf32>
    %35 = arith.mulf %31, %34 : vector<192x128xf32>
    %c0_18 = arith.constant 0 : index
    %c0_19 = arith.constant 0 : index
    %c0_20 = arith.constant 0 : index
    %36 = vector.load %arg6[%c0_18, %c0_19, %c0_20] : memref<2x192x1xf32, #tpu.memory_space<vmem>>, vector<1x192x1xf32>
    %37 = vector.shape_cast %36 : vector<1x192x1xf32> to vector<192x1xf32>
    %38 = vector.broadcast %37 : vector<192x1xf32> to vector<192x128xf32>
    %39 = arith.addf %35, %38 : vector<192x128xf32>
    %cst_21 = arith.constant 0.000000e+00 : f32
    %40 = vector.broadcast %cst_21 : f32 to vector<192x128xf32>
    %41 = arith.maximumf %39, %40 : vector<192x128xf32>
    %42 = arith.addf %7, %41 : vector<192x128xf32>
    %c1 = arith.constant 1 : index
    %c0_22 = arith.constant 0 : index
    %c0_23 = arith.constant 0 : index
    %43 = vector.load %arg4[%c1, %c0_22, %c0_23] : memref<2x192x192xbf16, #tpu.memory_space<vmem>>, vector<1x192x192xbf16>
    %44 = vector.shape_cast %43 : vector<1x192x192xbf16> to vector<192x192xbf16>
    %45 = arith.truncf %42 : vector<192x128xf32> to vector<192x128xbf16>
    %cst_24 = arith.constant dense<0.000000e+00> : vector<192x128xf32>
    %46 = tpu.matmul %44, %45, %cst_24 {dimension_numbers = #tpu.dot_dimension_numbers<[1], [0], [0], [1], [0, 0, 1, 1], [], []>} : vector<192x192xbf16>, vector<192x128xbf16>, vector<192x128xf32> -> vector<192x128xf32>
    %47 = vector.shape_cast %46 : vector<192x128xf32> to vector<6x32x128xf32>
    %cst_25 = arith.constant dense<0.000000e+00> : vector<6x128xf32>
    %48 = vector.multi_reduction <add>, %47, %cst_25 [1] : vector<6x32x128xf32> to vector<6x128xf32>
    %49 = vector.shape_cast %48 : vector<6x128xf32> to vector<6x1x128xf32>
    %cst_26 = arith.constant 3.200000e+01 : f32
    %50 = vector.broadcast %cst_26 : f32 to vector<6x1x128xf32>
    %51 = arith.divf %49, %50 : vector<6x1x128xf32>
    %52 = vector.broadcast %51 : vector<6x1x128xf32> to vector<6x32x128xf32>
    %53 = arith.subf %47, %52 : vector<6x32x128xf32>
    %54 = arith.mulf %53, %53 : vector<6x32x128xf32>
    %cst_27 = arith.constant dense<0.000000e+00> : vector<6x128xf32>
    %55 = vector.multi_reduction <add>, %54, %cst_27 [1] : vector<6x32x128xf32> to vector<6x128xf32>
    %56 = vector.shape_cast %55 : vector<6x128xf32> to vector<6x1x128xf32>
    %cst_28 = arith.constant 3.200000e+01 : f32
    %57 = vector.broadcast %cst_28 : f32 to vector<6x1x128xf32>
    %58 = arith.divf %56, %57 : vector<6x1x128xf32>
    %59 = vector.broadcast %51 : vector<6x1x128xf32> to vector<6x32x128xf32>
    %60 = arith.subf %47, %59 : vector<6x32x128xf32>
    %cst_29 = arith.constant 9.99999974E-6 : f32
    %61 = vector.broadcast %cst_29 : f32 to vector<6x1x128xf32>
    %62 = arith.addf %58, %61 : vector<6x1x128xf32>
    %63 = math.rsqrt %62 : vector<6x1x128xf32>
    %64 = vector.broadcast %63 : vector<6x1x128xf32> to vector<6x32x128xf32>
    %65 = arith.mulf %60, %64 : vector<6x32x128xf32>
    %66 = vector.shape_cast %65 : vector<6x32x128xf32> to vector<192x128xf32>
    %c1_30 = arith.constant 1 : index
    %c0_31 = arith.constant 0 : index
    %c0_32 = arith.constant 0 : index
    %67 = vector.load %arg5[%c1_30, %c0_31, %c0_32] : memref<2x192x1xf32, #tpu.memory_space<vmem>>, vector<1x192x1xf32>
    %68 = vector.shape_cast %67 : vector<1x192x1xf32> to vector<192x1xf32>
    %69 = vector.broadcast %68 : vector<192x1xf32> to vector<192x128xf32>
    %70 = arith.mulf %66, %69 : vector<192x128xf32>
    %c1_33 = arith.constant 1 : index
    %c0_34 = arith.constant 0 : index
    %c0_35 = arith.constant 0 : index
    %71 = vector.load %arg6[%c1_33, %c0_34, %c0_35] : memref<2x192x1xf32, #tpu.memory_space<vmem>>, vector<1x192x1xf32>
    %72 = vector.shape_cast %71 : vector<1x192x1xf32> to vector<192x1xf32>
    %73 = vector.broadcast %72 : vector<192x1xf32> to vector<192x128xf32>
    %74 = arith.addf %70, %73 : vector<192x128xf32>
    %cst_36 = arith.constant 0.000000e+00 : f32
    %75 = vector.broadcast %cst_36 : f32 to vector<192x128xf32>
    %76 = arith.maximumf %74, %75 : vector<192x128xf32>
    %77 = arith.addf %42, %76 : vector<192x128xf32>
    %c0_37 = arith.constant 0 : index
    %c0_38 = arith.constant 0 : index
    %78 = vector.load %arg7[%c0_37, %c0_38] : memref<192x128xf32, #tpu.memory_space<vmem>>, vector<192x128xf32>
    tpu.vector_store %arg7[%c0_37, %c0_38], %77 {strides = array<i32>} : memref<192x128xf32, #tpu.memory_space<vmem>>, vector<192x128xf32>,
    return
  }
  func.func @transform_0(%arg0: i32) -> (i32, i32) {
    %c0_i32 = arith.constant 0 : i32
    %c0_i32_0 = arith.constant 0 : i32
    return %c0_i32, %arg0 : i32, i32
  }
  func.func @transform_1(%arg0: i32) -> (i32, i32) {
    %c0_i32 = arith.constant 0 : i32
    %c0_i32_0 = arith.constant 0 : i32
    %c0_i32_1 = arith.constant 0 : i32
    return %c0_i32, %c0_i32_0 : i32, i32
  }
  func.func @transform_2(%arg0: i32) -> (i32, i32) {
    %c0_i32 = arith.constant 0 : i32
    %c0_i32_0 = arith.constant 0 : i32
    %c0_i32_1 = arith.constant 0 : i32
    return %c0_i32, %c0_i32_0 : i32, i32
  }
  func.func @transform_3(%arg0: i32) -> (i32, i32, i32) {
    %c0_i32 = arith.constant 0 : i32
    %c0_i32_0 = arith.constant 0 : i32
    %c0_i32_1 = arith.constant 0 : i32
    %c0_i32_2 = arith.constant 0 : i32
    return %c0_i32, %c0_i32_0, %c0_i32_1 : i32, i32, i32
  }
  func.func @transform_4(%arg0: i32) -> (i32, i32, i32) {
    %c0_i32 = arith.constant 0 : i32
    %c0_i32_0 = arith.constant 0 : i32
    %c0_i32_1 = arith.constant 0 : i32
    %c0_i32_2 = arith.constant 0 : i32
    return %c0_i32, %c0_i32_0, %c0_i32_1 : i32, i32, i32
  }
  func.func @transform_5(%arg0: i32) -> (i32, i32, i32) {
    %c0_i32 = arith.constant 0 : i32
    %c0_i32_0 = arith.constant 0 : i32
    %c0_i32_1 = arith.constant 0 : i32
    %c0_i32_2 = arith.constant 0 : i32
    return %c0_i32, %c0_i32_0, %c0_i32_1 : i32, i32, i32
  }
  func.func @transform_6(%arg0: i32) -> (i32, i32) {
    %c0_i32 = arith.constant 0 : i32
    %c0_i32_0 = arith.constant 0 : i32
    return %c0_i32, %arg0 : i32, i32
  }
}

</mosaic_0001>

<llo_original>
// kernel: tpu_custom_call.1
$region0: #{tpu_custom_call.1}
  #allocation0 [shape = 'u32[]', space=smem, size = 0x4, offset = 0x4, fixed_abs, tag = 'smem constant byte address 0x4 - core index']
  #allocation1 [shape = 'u32[144,128]{1,0:T(1,128)}', space=vmem, size = 0x12000, scoped, tag = 'internal scratch']
  %s0 = inlined_call_operand.vmem [shape: f32[48,128], index: 0, kind: input, shape index: {}]
  %s1 = inlined_call_operand.vmem [shape: f32[192,48], index: 1, kind: input, shape index: {}]
  %s2 = inlined_call_operand.vmem [shape: f32[192,1], index: 2, kind: input, shape index: {}]
  %s3 = inlined_call_operand.vmem [shape: bf16[2,192,192], index: 3, kind: input, shape index: {}]
  %s4 = inlined_call_operand.vmem [shape: f32[2,192,1], index: 4, kind: input, shape index: {}]
  %s5 = inlined_call_operand.vmem [shape: f32[2,192,1], index: 5, kind: input, shape index: {}]
  %s6 = inlined_call_operand.hbm [shape: f32[192,128], index: 6, kind: output, shape index: {}]
  %s7 = sld [smem:[#allocation0]]
  $region34: #{tpu_custom_call.1} parent=0
    _
  %s9 = ssub.s32 1, %s7
  %s10 = scalar_select 0, %s9, %s7
  $region1: #{tpu_custom_call.1} parent=0
    #allocation2 [shape = 'u8[98304]{0}', space=vmem, size = 0x18000, scoped, tag = 'output window, operand 0, single buffered']
    #allocation3 [shape = 's32[1]{0}', space=sflag, size = 0x4, scoped, tag = 'scoped memory for tpu_custom_call.1']
    %11 = vsyncpa [#allocation3], 0
    // Predicated region
    $region2: #{tpu_custom_call.1} parent=1 // pred_check
      _
    $region3: #{tpu_custom_call.1} parent=1 // pred_check_branch
      %13 = sbr.rel (0) target = $region5
    $region4: #{tpu_custom_call.1} parent=1 // pred_region
      _
    $region5: #{tpu_custom_call.1} parent=1 // pred_fallthru
      _
    // Predicated region
    $region6: #{tpu_custom_call.1} parent=1 // pred_check
      _
    $region7: #{tpu_custom_call.1} parent=1 // pred_check_branch
      %15 = sbr.rel (0) target = $region9
    $region8: #{tpu_custom_call.1} parent=1 // pred_region
      _
    $region9: #{tpu_custom_call.1} parent=1 // pred_fallthru
      _
    // Predicated region
    $region10: #{tpu_custom_call.1} parent=1 // pred_check
      _
    $region11: #{tpu_custom_call.1} parent=1 // pred_check_branch
      %17 = sbr.rel (0) target = $region13
    $region12: #{tpu_custom_call.1} parent=1 // pred_region
      _
    $region13: #{tpu_custom_call.1} parent=1 // pred_fallthru
      _
    // Predicated region
    $region14: #{tpu_custom_call.1} parent=1 // pred_check
      _
    $region15: #{tpu_custom_call.1} parent=1 // pred_check_branch
      %19 = sbr.rel (0) target = $region17
    $region16: #{tpu_custom_call.1} parent=1 // pred_region
      _
    $region17: #{tpu_custom_call.1} parent=1 // pred_fallthru
      _
    // Predicated region
    $region18: #{tpu_custom_call.1} parent=1 // pred_check
      _
    $region19: #{tpu_custom_call.1} parent=1 // pred_check_branch
      %21 = sbr.rel (0) target = $region21
    $region20: #{tpu_custom_call.1} parent=1 // pred_region
      _
    $region21: #{tpu_custom_call.1} parent=1 // pred_fallthru
      _
    // Predicated region
    $region22: #{tpu_custom_call.1} parent=1 // pred_check
      _
    $region23: #{tpu_custom_call.1} parent=1 // pred_check_branch
      %23 = sbr.rel (0) target = $region25
    $region24: #{tpu_custom_call.1} parent=1 // pred_region
      _
    $region25: #{tpu_custom_call.1} parent=1 // pred_fallthru
      _
    %v25 = vld [vmem:[%s1] sm:$0xff]
    %v26 = vld [vmem:[%s1 + $0x8] sm:$0xff]
    %v27 = vld [vmem:[%s1 + $0x10] sm:$0xff]
    %v28 = vld [vmem:[%s1 + $0x18] sm:$0xff]
    %v29 = vld [vmem:[%s1 + $0x20] sm:$0xff]
    %v30 = vld [vmem:[%s1 + $0x28] sm:$0xff]
    %v31 = vld [vmem:[%s1 + $0x30] sm:$0xff]
    %v32 = vld [vmem:[%s1 + $0x38] sm:$0xff]
    %v33 = vld [vmem:[%s1 + $0x40] sm:$0xff]
    %v34 = vld [vmem:[%s1 + $0x48] sm:$0xff]
    %v35 = vld [vmem:[%s1 + $0x50] sm:$0xff]
    %v36 = vld [vmem:[%s1 + $0x58] sm:$0xff]
    %v37 = vld [vmem:[%s1 + $0x60] sm:$0xff]
    %v38 = vld [vmem:[%s1 + $0x68] sm:$0xff]
    %v39 = vld [vmem:[%s1 + $0x70] sm:$0xff]
    %v40 = vld [vmem:[%s1 + $0x78] sm:$0xff]
    %v41 = vld [vmem:[%s1 + $0x80] sm:$0xff]
    %v42 = vld [vmem:[%s1 + $0x88] sm:$0xff]
    %v43 = vld [vmem:[%s1 + $0x90] sm:$0xff]
    %v44 = vld [vmem:[%s1 + $0x98] sm:$0xff]
    %v45 = vld [vmem:[%s1 + $0xa0] sm:$0xff]
    %v46 = vld [vmem:[%s1 + $0xa8] sm:$0xff]
    %v47 = vld [vmem:[%s1 + $0xb0] sm:$0xff]
    %v48 = vld [vmem:[%s1 + $0xb8] sm:$0xff]
    %v49 = vld [vmem:[%s0] sm:$0xff]
    %v50 = vld [vmem:[%s0 + $0x8] sm:$0xff]
    %v51 = vld [vmem:[%s0 + $0x10] sm:$0xff]
    %v52 = vld [vmem:[%s0 + $0x18] sm:$0xff]
    %v53 = vld [vmem:[%s0 + $0x20] sm:$0xff]
    %v54 = vld [vmem:[%s0 + $0x28] sm:$0xff]
    %v55 = vld [vmem:[%s2] sm:$0xff]
    %v56 = vld [vmem:[%s2 + $0x8] sm:$0xff]
    %v57 = vld [vmem:[%s2 + $0x10] sm:$0xff]
    %v58 = vld [vmem:[%s2 + $0x18] sm:$0xff]
    %v59 = vld [vmem:[%s2 + $0x20] sm:$0xff]
    %v60 = vld [vmem:[%s2 + $0x28] sm:$0xff]
    %v61 = vld [vmem:[%s2 + $0x30] sm:$0xff]
    %v62 = vld [vmem:[%s2 + $0x38] sm:$0xff]
    %v63 = vld [vmem:[%s2 + $0x40] sm:$0xff]
    %v64 = vld [vmem:[%s2 + $0x48] sm:$0xff]
    %v65 = vld [vmem:[%s2 + $0x50] sm:$0xff]
    %v66 = vld [vmem:[%s2 + $0x58] sm:$0xff]
    %v67 = vld [vmem:[%s2 + $0x60] sm:$0xff]
    %v68 = vld [vmem:[%s2 + $0x68] sm:$0xff]
    %v69 = vld [vmem:[%s2 + $0x70] sm:$0xff]
    %v70 = vld [vmem:[%s2 + $0x78] sm:$0xff]
    %v71 = vld [vmem:[%s2 + $0x80] sm:$0xff]
    %v72 = vld [vmem:[%s2 + $0x88] sm:$0xff]
    %v73 = vld [vmem:[%s2 + $0x90] sm:$0xff]
    %v74 = vld [vmem:[%s2 + $0x98] sm:$0xff]
    %v75 = vld [vmem:[%s2 + $0xa0] sm:$0xff]
    %v76 = vld [vmem:[%s2 + $0xa8] sm:$0xff]
    %v77 = vld [vmem:[%s2 + $0xb0] sm:$0xff]
    %v78 = vld [vmem:[%s2 + $0xb8] sm:$0xff]
    %80 = vset.pattern.permute.xlu0 0
    %81 = vperm.xlu0 %80, %v55
    %v82 = vpop.permute.xlu0 %81
    %85 = vset.pattern.permute.xlu0 0
    %86 = vperm.xlu0 %85, %v56
    %v87 = vpop.permute.xlu0 %86
    %90 = vset.pattern.permute.xlu0 0
    %91 = vperm.xlu0 %90, %v57
    %v92 = vpop.permute.xlu0 %91
    %95 = vset.pattern.permute.xlu0 0
    %96 = vperm.xlu0 %95, %v58
    %v97 = vpop.permute.xlu0 %96
    %100 = vset.pattern.permute.xlu0 0
    %101 = vperm.xlu0 %100, %v59
    %v102 = vpop.permute.xlu0 %101
    %105 = vset.pattern.permute.xlu0 0
    %106 = vperm.xlu0 %105, %v60
    %v107 = vpop.permute.xlu0 %106
    %110 = vset.pattern.permute.xlu0 0
    %111 = vperm.xlu0 %110, %v61
    %v112 = vpop.permute.xlu0 %111
    %115 = vset.pattern.permute.xlu0 0
    %116 = vperm.xlu0 %115, %v62
    %v117 = vpop.permute.xlu0 %116
    %120 = vset.pattern.permute.xlu0 0
    %121 = vperm.xlu0 %120, %v63
    %v122 = vpop.permute.xlu0 %121
    %125 = vset.pattern.permute.xlu0 0
    %126 = vperm.xlu0 %125, %v64
    %v127 = vpop.permute.xlu0 %126
    %130 = vset.pattern.permute.xlu0 0
    %131 = vperm.xlu0 %130, %v65
    %v132 = vpop.permute.xlu0 %131
    %135 = vset.pattern.permute.xlu0 0
    %136 = vperm.xlu0 %135, %v66
    %v137 = vpop.permute.xlu0 %136
    %140 = vset.pattern.permute.xlu0 0
    %141 = vperm.xlu0 %140, %v67
    %v142 = vpop.permute.xlu0 %141
    %145 = vset.pattern.permute.xlu0 0
    %146 = vperm.xlu0 %145, %v68
    %v147 = vpop.permute.xlu0 %146
    %150 = vset.pattern.permute.xlu0 0
    %151 = vperm.xlu0 %150, %v69
    %v152 = vpop.permute.xlu0 %151
    %155 = vset.pattern.permute.xlu0 0
    %156 = vperm.xlu0 %155, %v70
    %v157 = vpop.permute.xlu0 %156
    %160 = vset.pattern.permute.xlu0 0
    %161 = vperm.xlu0 %160, %v71
    %v162 = vpop.permute.xlu0 %161
    %165 = vset.pattern.permute.xlu0 0
    %166 = vperm.xlu0 %165, %v72
    %v167 = vpop.permute.xlu0 %166
    %170 = vset.pattern.permute.xlu0 0
    %171 = vperm.xlu0 %170, %v73
    %v172 = vpop.permute.xlu0 %171
    %175 = vset.pattern.permute.xlu0 0
    %176 = vperm.xlu0 %175, %v74
    %v177 = vpop.permute.xlu0 %176
    %180 = vset.pattern.permute.xlu0 0
    %181 = vperm.xlu0 %180, %v75
    %v182 = vpop.permute.xlu0 %181
    %185 = vset.pattern.permute.xlu0 0
    %186 = vperm.xlu0 %185, %v76
    %v187 = vpop.permute.xlu0 %186
    %190 = vset.pattern.permute.xlu0 0
    %191 = vperm.xlu0 %190, %v77
    %v192 = vpop.permute.xlu0 %191
    %195 = vset.pattern.permute.xlu0 0
    %196 = vperm.xlu0 %195, %v78
    %v197 = vpop.permute.xlu0 %196
    %vm199 = vcmask 392192
    %v201 = vsel %vm199, %v25, 0
    %v204 = vsel %vm199, %v26, 0
    %v207 = vsel %vm199, %v27, 0
    %v210 = vsel %vm199, %v28, 0
    %v213 = vsel %vm199, %v29, 0
    %v216 = vsel %vm199, %v30, 0
    %v219 = vsel %vm199, %v31, 0
    %v222 = vsel %vm199, %v32, 0
    %v225 = vsel %vm199, %v33, 0
    %v228 = vsel %vm199, %v34, 0
    %v231 = vsel %vm199, %v35, 0
    %v234 = vsel %vm199, %v36, 0
    %v237 = vsel %vm199, %v37, 0
    %v240 = vsel %vm199, %v38, 0
    %v243 = vsel %vm199, %v39, 0
    %v246 = vsel %vm199, %v40, 0
    %v249 = vsel %vm199, %v41, 0
    %v252 = vsel %vm199, %v42, 0
    %v255 = vsel %vm199, %v43, 0
    %v258 = vsel %vm199, %v44, 0
    %v261 = vsel %vm199, %v45, 0
    %v264 = vsel %vm199, %v46, 0
    %v267 = vsel %vm199, %v47, 0
    %v270 = vsel %vm199, %v48, 0
    %272 = vmatprep.subr.mxu0 0.0
    %273 = vmatpush1.msra.mxu0 %v49
    %274 = vmatprep.subr.mxu0 0.0
    %275 = vmatpush1.msra.mxu0 %v50
    %276 = vmatprep.subr.mxu0 0.0
    %277 = vmatpush1.msra.mxu0 %v51
    %278 = vmatprep.subr.mxu0 0.0
    %279 = vmatpush1.msra.mxu0 %v52
    %280 = vmatprep.subr.mxu0 0.0
    %281 = vmatpush1.msra.mxu0 %v53
    %282 = vmatprep.subr.mxu0 0.0
    %283 = vmatpush1.msra.mxu0 %v54
    %284 = vmatprep.subr.mxu0 0.0
    %285 = vmatpush1.msra.mxu0 0.0
    %286 = vmatprep.subr.mxu0 0.0
    %287 = vmatpush1.msra.mxu0 0.0
    %288 = vmatprep.subr.mxu0 0.0
    %289 = vmatpush1.msra.mxu0 0.0
    %290 = vmatprep.subr.mxu0 0.0
    %291 = vmatpush1.msra.mxu0 0.0
    %292 = vmatprep.subr.mxu0 0.0
    %293 = vmatpush1.msra.mxu0 0.0
    %294 = vmatprep.subr.mxu0 0.0
    %295 = vmatpush1.msra.mxu0 0.0
    %296 = vmatprep.subr.mxu0 0.0
    %297 = vmatpush1.msra.mxu0 0.0
    %298 = vmatprep.subr.mxu0 0.0
    %299 = vmatpush1.msra.mxu0 0.0
    %300 = vmatprep.subr.mxu0 0.0
    %301 = vmatpush1.msra.mxu0 0.0
    %302 = vmatprep.subr.mxu0 0.0
    %303 = vmatpush1.msra.mxu0 0.0
    %304 = vmatprep.subr.mxu0 0.0
    %305 = vmatpush1.msra.mxu0 0.0
    %306 = vmatprep.subr.mxu0 0.0
    %307 = vmatpush1.msra.mxu0 0.0
    %308 = vmatprep.subr.mxu0 0.0
    %309 = vmatpush1.msra.mxu0 0.0
    %310 = vmatprep.subr.mxu0 0.0
    %311 = vmatpush1.msra.mxu0 0.0
    %312 = vmatprep.subr.mxu0 0.0
    %313 = vmatpush1.msra.mxu0 0.0
    %314 = vmatprep.subr.mxu0 0.0
    %315 = vmatpush1.msra.mxu0 0.0
    %316 = vmatprep.subr.mxu0 0.0
    %317 = vmatpush1.msra.mxu0 0.0
    %318 = vmatprep.subr.mxu0 0.0
    %319 = vmatpush1.msra.mxu0 0.0
    %320 = vmatprep.subr.mxu0 0.0
    %321 = vmatpush1.msra.mxu0 0.0
    %322 = vmatprep.subr.mxu0 0.0
    %323 = vmatpush1.msra.mxu0 0.0
    %324 = vmatprep.subr.mxu0 0.0
    %325 = vmatpush1.msra.mxu0 0.0
    %326 = vmatprep.subr.mxu0 0.0
    %327 = vmatpush1.msra.mxu0 0.0
    %328 = vmatprep.subr.mxu0 0.0
    %329 = vmatpush1.msra.mxu0 0.0
    %330 = vmatprep.subr.mxu0 0.0
    %331 = vmatpush1.msra.mxu0 0.0
    %332 = vmatprep.subr.mxu0 0.0
    %333 = vmatpush1.msra.mxu0 0.0
    %334 = vmatprep.subr.mxu0 0.0
    %335 = vmatpush1.msra.mxu0 0.0
    %336 = vmatprep.mubr.f32.mxu0 0.0
    %337 = vmatmul.mubr.f32.gmra.mrb[0].mxu0 %v201
    %v338 = vpop.f32.mrb[0].mxu0
    %v339 = vadd.f32 %v82, %v338
    %v340 = vpop.f32.mrb[0].mxu0
    %341 = vmatprep.mubr.f32.mxu0 0.0
    %342 = vmatmul.mubr.f32.gmra.mrb[0].mxu0 %v204
    %v343 = vpop.f32.mrb[0].mxu0
    %v344 = vadd.f32 %v87, %v343
    %v345 = vpop.f32.mrb[0].mxu0
    %346 = vmatprep.mubr.f32.mxu0 0.0
    %347 = vmatmul.mubr.f32.gmra.mrb[0].mxu0 %v207
    %v348 = vpop.f32.mrb[0].mxu0
    %v349 = vadd.f32 %v92, %v348
    %v350 = vpop.f32.mrb[0].mxu0
    %351 = vmatprep.mubr.f32.mxu0 0.0
    %352 = vmatmul.mubr.f32.gmra.mrb[0].mxu0 %v210
    %v353 = vpop.f32.mrb[0].mxu0
    %v354 = vadd.f32 %v97, %v353
    %v355 = vpop.f32.mrb[0].mxu0
    %356 = vmatprep.mubr.f32.mxu0 0.0
    %357 = vmatmul.mubr.f32.gmra.mrb[0].mxu0 %v213
    %v358 = vpop.f32.mrb[0].mxu0
    %v359 = vadd.f32 %v102, %v358
    %v360 = vpop.f32.mrb[0].mxu0
    %361 = vmatprep.mubr.f32.mxu0 0.0
    %362 = vmatmul.mubr.f32.gmra.mrb[0].mxu0 %v216
    %v363 = vpop.f32.mrb[0].mxu0
    %v364 = vadd.f32 %v107, %v363
    %v365 = vpop.f32.mrb[0].mxu0
    %366 = vmatprep.mubr.f32.mxu0 0.0
    %367 = vmatmul.mubr.f32.gmra.mrb[0].mxu0 %v219
    %v368 = vpop.f32.mrb[0].mxu0
    %v369 = vadd.f32 %v112, %v368
    %v370 = vpop.f32.mrb[0].mxu0
    %371 = vmatprep.mubr.f32.mxu0 0.0
    %372 = vmatmul.mubr.f32.gmra.mrb[0].mxu0 %v222
    %v373 = vpop.f32.mrb[0].mxu0
    %v374 = vadd.f32 %v117, %v373
    %v375 = vpop.f32.mrb[0].mxu0
    %376 = vmatprep.mubr.f32.mxu0 0.0
    %377 = vmatmul.mubr.f32.gmra.mrb[0].mxu0 %v225
    %v378 = vpop.f32.mrb[0].mxu0
    %v379 = vadd.f32 %v122, %v378
    %v380 = vpop.f32.mrb[0].mxu0
    %381 = vmatprep.mubr.f32.mxu0 0.0
    %382 = vmatmul.mubr.f32.gmra.mrb[0].mxu0 %v228
    %v383 = vpop.f32.mrb[0].mxu0
    %v384 = vadd.f32 %v127, %v383
    %v385 = vpop.f32.mrb[0].mxu0
    %386 = vmatprep.mubr.f32.mxu0 0.0
    %387 = vmatmul.mubr.f32.gmra.mrb[0].mxu0 %v231
    %v388 = vpop.f32.mrb[0].mxu0
    %v389 = vadd.f32 %v132, %v388
    %v390 = vpop.f32.mrb[0].mxu0
    %391 = vmatprep.mubr.f32.mxu0 0.0
    %392 = vmatmul.mubr.f32.gmra.mrb[0].mxu0 %v234
    %v393 = vpop.f32.mrb[0].mxu0
    %v394 = vadd.f32 %v137, %v393
    %v395 = vpop.f32.mrb[0].mxu0
    %396 = vmatprep.mubr.f32.mxu0 0.0
    %397 = vmatmul.mubr.f32.gmra.mrb[0].mxu0 %v237
    %v398 = vpop.f32.mrb[0].mxu0
    %v399 = vadd.f32 %v142, %v398
    %v400 = vpop.f32.mrb[0].mxu0
    %401 = vmatprep.mubr.f32.mxu0 0.0
    %402 = vmatmul.mubr.f32.gmra.mrb[0].mxu0 %v240
    %v403 = vpop.f32.mrb[0].mxu0
    %v404 = vadd.f32 %v147, %v403
    %v405 = vpop.f32.mrb[0].mxu0
    %406 = vmatprep.mubr.f32.mxu0 0.0
    %407 = vmatmul.mubr.f32.gmra.mrb[0].mxu0 %v243
    %v408 = vpop.f32.mrb[0].mxu0
    %v409 = vadd.f32 %v152, %v408
    %v410 = vpop.f32.mrb[0].mxu0
    %411 = vmatprep.mubr.f32.mxu0 0.0
    %412 = vmatmul.mubr.f32.gmra.mrb[0].mxu0 %v246
    %v413 = vpop.f32.mrb[0].mxu0
    %v414 = vadd.f32 %v157, %v413
    %v415 = vpop.f32.mrb[0].mxu0
    %416 = vmatprep.mubr.f32.mxu0 0.0
    %417 = vmatmul.mubr.f32.gmra.mrb[0].mxu0 %v249
    %v418 = vpop.f32.mrb[0].mxu0
    %v419 = vadd.f32 %v162, %v418
    %v420 = vpop.f32.mrb[0].mxu0
    %421 = vmatprep.mubr.f32.mxu0 0.0
    %422 = vmatmul.mubr.f32.gmra.mrb[0].mxu0 %v252
    %v423 = vpop.f32.mrb[0].mxu0
    %v424 = vadd.f32 %v167, %v423
    %v425 = vpop.f32.mrb[0].mxu0
    %426 = vmatprep.mubr.f32.mxu0 0.0
    %427 = vmatmul.mubr.f32.gmra.mrb[0].mxu0 %v255
    %v428 = vpop.f32.mrb[0].mxu0
    %v429 = vadd.f32 %v172, %v428
    %v430 = vpop.f32.mrb[0].mxu0
    %431 = vmatprep.mubr.f32.mxu0 0.0
    %432 = vmatmul.mubr.f32.gmra.mrb[0].mxu0 %v258
    %v433 = vpop.f32.mrb[0].mxu0
    %v434 = vadd.f32 %v177, %v433
    %v435 = vpop.f32.mrb[0].mxu0
    %436 = vmatprep.mubr.f32.mxu0 0.0
    %437 = vmatmul.mubr.f32.gmra.mrb[0].mxu0 %v261
    %v438 = vpop.f32.mrb[0].mxu0
    %v439 = vadd.f32 %v182, %v438
    %v440 = vpop.f32.mrb[0].mxu0
    %441 = vmatprep.mubr.f32.mxu0 0.0
    %442 = vmatmul.mubr.f32.gmra.mrb[0].mxu0 %v264
    %v443 = vpop.f32.mrb[0].mxu0
    %v444 = vadd.f32 %v187, %v443
    %v445 = vpop.f32.mrb[0].mxu0
    %446 = vmatprep.mubr.f32.mxu0 0.0
    %447 = vmatmul.mubr.f32.gmra.mrb[0].mxu0 %v267
    %v448 = vpop.f32.mrb[0].mxu0
    %v449 = vadd.f32 %v192, %v448
    %v450 = vpop.f32.mrb[0].mxu0
    %451 = vmatprep.mubr.f32.mxu0 0.0
    %452 = vmatmul.mubr.f32.gmra.mrb[0].mxu0 %v270
    %v453 = vpop.f32.mrb[0].mxu0
    %v454 = vadd.f32 %v197, %v453
    %v455 = vpop.f32.mrb[0].mxu0
    %456 = vdwg.mxu0
    %v457 = vmax.f32 %v339, 0.0
    %v458 = vmax.f32 %v344, 0.0
    %v459 = vmax.f32 %v349, 0.0
    %v460 = vmax.f32 %v354, 0.0
    %v461 = vmax.f32 %v359, 0.0
    %v462 = vmax.f32 %v364, 0.0
    %v463 = vmax.f32 %v369, 0.0
    %v464 = vmax.f32 %v374, 0.0
    %v465 = vmax.f32 %v379, 0.0
    %v466 = vmax.f32 %v384, 0.0
    %v467 = vmax.f32 %v389, 0.0
    %v468 = vmax.f32 %v394, 0.0
    %v469 = vmax.f32 %v399, 0.0
    %v470 = vmax.f32 %v404, 0.0
    %v471 = vmax.f32 %v409, 0.0
    %v472 = vmax.f32 %v414, 0.0
    %v473 = vmax.f32 %v419, 0.0
    %v474 = vmax.f32 %v424, 0.0
    %v475 = vmax.f32 %v429, 0.0
    %v476 = vmax.f32 %v434, 0.0
    %v477 = vmax.f32 %v439, 0.0
    %v478 = vmax.f32 %v444, 0.0
    %v479 = vmax.f32 %v449, 0.0
    %v480 = vmax.f32 %v454, 0.0
    %v481 = vld [vmem:[%s3] sm:$0xff]
    %v482 = vld [vmem:[%s3 + $0x8] sm:$0xff]
    %v483 = vld [vmem:[%s3 + $0x10] sm:$0xff]
    %v484 = vld [vmem:[%s3 + $0x18] sm:$0xff]
    %v485 = vld [vmem:[%s3 + $0x20] sm:$0xff]
    %v486 = vld [vmem:[%s3 + $0x28] sm:$0xff]
    %v487 = vld [vmem:[%s3 + $0x30] sm:$0xff]
    %v488 = vld [vmem:[%s3 + $0x38] sm:$0xff]
    %v489 = vld [vmem:[%s3 + $0x40] sm:$0xff]
    %v490 = vld [vmem:[%s3 + $0x48] sm:$0xff]
    %v491 = vld [vmem:[%s3 + $0x50] sm:$0xff]
    %v492 = vld [vmem:[%s3 + $0x58] sm:$0xff]
    %v493 = vld [vmem:[%s3 + $0x60] sm:$0xff]
    %v494 = vld [vmem:[%s3 + $0x68] sm:$0xff]
    %v495 = vld [vmem:[%s3 + $0x70] sm:$0xff]
    %v496 = vld [vmem:[%s3 + $0x78] sm:$0xff]
    %v497 = vld [vmem:[%s3 + $0x80] sm:$0xff]
    %v498 = vld [vmem:[%s3 + $0x88] sm:$0xff]
    %v499 = vld [vmem:[%s3 + $0x90] sm:$0xff]
    %v500 = vld [vmem:[%s3 + $0x98] sm:$0xff]
    %v501 = vld [vmem:[%s3 + $0xa0] sm:$0xff]
    %v502 = vld [vmem:[%s3 + $0xa8] sm:$0xff]
    %v503 = vld [vmem:[%s3 + $0xb0] sm:$0xff]
    %v504 = vld [vmem:[%s3 + $0xb8] sm:$0xff]
    %v505 = vpack.c.bf16 %v458, %v457
    %v506 = vpack.c.bf16 %v460, %v459
    %v507 = vpack.c.bf16 %v462, %v461
    %v508 = vpack.c.bf16 %v464, %v463
    %v509 = vpack.c.bf16 %v466, %v465
    %v510 = vpack.c.bf16 %v468, %v467
    %v511 = vpack.c.bf16 %v470, %v469
    %v512 = vpack.c.bf16 %v472, %v471
    %v513 = vpack.c.bf16 %v474, %v473
    %v514 = vpack.c.bf16 %v476, %v475
    %v515 = vpack.c.bf16 %v478, %v477
    %v516 = vpack.c.bf16 %v480, %v479
    %v541 = vunpack.c.l.b16 %v481
    %v542 = vunpack.c.h.b16 %v481
    %v543 = vunpack.c.l.b16 %v482
    %v544 = vunpack.c.h.b16 %v482
    %v545 = vunpack.c.l.b16 %v483
    %v546 = vunpack.c.h.b16 %v483
    %v547 = vunpack.c.l.b16 %v484
    %v548 = vunpack.c.h.b16 %v484
    %v549 = vunpack.c.l.b16 %v485
    %v550 = vunpack.c.h.b16 %v485
    %v551 = vunpack.c.l.b16 %v486
    %v552 = vunpack.c.h.b16 %v486
    %v553 = vunpack.c.l.b16 %v487
    %v554 = vunpack.c.h.b16 %v487
    %v555 = vunpack.c.l.b16 %v488
    %v556 = vunpack.c.h.b16 %v488
    %v557 = vunpack.c.l.b16 %v489
    %v558 = vunpack.c.h.b16 %v489
    %v559 = vunpack.c.l.b16 %v490
    %v560 = vunpack.c.h.b16 %v490
    %v561 = vunpack.c.l.b16 %v491
    %v562 = vunpack.c.h.b16 %v491
    %v563 = vunpack.c.l.b16 %v492
    %v564 = vunpack.c.h.b16 %v492
    %v565 = vunpack.c.l.b16 %v493
    %v566 = vunpack.c.h.b16 %v493
    %v567 = vunpack.c.l.b16 %v494
    %v568 = vunpack.c.h.b16 %v494
    %v569 = vunpack.c.l.b16 %v495
    %v570 = vunpack.c.h.b16 %v495
    %v571 = vunpack.c.l.b16 %v496
    %v572 = vunpack.c.h.b16 %v496
    %v573 = vunpack.c.l.b16 %v497
    %v574 = vunpack.c.h.b16 %v497
    %v575 = vunpack.c.l.b16 %v498
    %v576 = vunpack.c.h.b16 %v498
    %v577 = vunpack.c.l.b16 %v499
    %v578 = vunpack.c.h.b16 %v499
    %v579 = vunpack.c.l.b16 %v500
    %v580 = vunpack.c.h.b16 %v500
    %v581 = vunpack.c.l.b16 %v501
    %v582 = vunpack.c.h.b16 %v501
    %v583 = vunpack.c.l.b16 %v502
    %v584 = vunpack.c.h.b16 %v502
    %v585 = vunpack.c.l.b16 %v503
    %v586 = vunpack.c.h.b16 %v503
    %v587 = vunpack.c.l.b16 %v504
    %v588 = vunpack.c.h.b16 %v504
    %v589 = vpack.c.b16 %v543, %v541
    %v590 = vpack.c.b16 %v544, %v542
    %v591 = vpack.c.b16 %v547, %v545
    %v592 = vpack.c.b16 %v548, %v546
    %v593 = vpack.c.b16 %v551, %v549
    %v594 = vpack.c.b16 %v552, %v550
    %v595 = vpack.c.b16 %v555, %v553
    %v596 = vpack.c.b16 %v556, %v554
    %v597 = vpack.c.b16 %v559, %v557
    %v598 = vpack.c.b16 %v560, %v558
    %v599 = vpack.c.b16 %v563, %v561
    %v600 = vpack.c.b16 %v564, %v562
    %v601 = vpack.c.b16 %v567, %v565
    %v602 = vpack.c.b16 %v568, %v566
    %v603 = vpack.c.b16 %v571, %v569
    %v604 = vpack.c.b16 %v572, %v570
    %v605 = vpack.c.b16 %v575, %v573
    %v606 = vpack.c.b16 %v576, %v574
    %v607 = vpack.c.b16 %v579, %v577
    %v608 = vpack.c.b16 %v580, %v578
    %v609 = vpack.c.b16 %v583, %v581
    %v610 = vpack.c.b16 %v584, %v582
    %v611 = vpack.c.b16 %v587, %v585
    %v612 = vpack.c.b16 %v588, %v586
    %vm625 = vcmask 523264
    %v627 = vsel %vm625, %v590, 0
    %v630 = vsel %vm625, %v592, 0
    %v633 = vsel %vm625, %v594, 0
    %v636 = vsel %vm625, %v596, 0
    %v639 = vsel %vm625, %v598, 0
    %v642 = vsel %vm625, %v600, 0
    %v645 = vsel %vm625, %v602, 0
    %v648 = vsel %vm625, %v604, 0
    %v651 = vsel %vm625, %v606, 0
    %v654 = vsel %vm625, %v608, 0
    %v657 = vsel %vm625, %v610, 0
    %v660 = vsel %vm625, %v612, 0
    %662 = vmatprep.subr.bf16.mxu0 0
    %663 = vmatpush1.bf16.msra.mxu0 %v505
    %664 = vmatprep.subr.bf16.mxu0 0
    %665 = vmatpush1.bf16.msra.mxu0 %v506
    %666 = vmatprep.subr.bf16.mxu0 0
    %667 = vmatpush1.bf16.msra.mxu0 %v507
    %668 = vmatprep.subr.bf16.mxu0 0
    %669 = vmatpush1.bf16.msra.mxu0 %v508
    %670 = vmatprep.subr.bf16.mxu0 0
    %671 = vmatpush1.bf16.msra.mxu0 %v509
    %672 = vmatprep.subr.bf16.mxu0 0
    %673 = vmatpush1.bf16.msra.mxu0 %v510
    %674 = vmatprep.subr.bf16.mxu0 0
    %675 = vmatpush1.bf16.msra.mxu0 %v511
    %676 = vmatprep.subr.bf16.mxu0 0
    %677 = vmatpush1.bf16.msra.mxu0 %v512
    %678 = vmatprep.subr.bf16.mxu0 0
    %679 = vmatpush1.bf16.msra.mxu0 %v513
    %680 = vmatprep.subr.bf16.mxu0 0
    %681 = vmatpush1.bf16.msra.mxu0 %v514
    %682 = vmatprep.subr.bf16.mxu0 0
    %683 = vmatpush1.bf16.msra.mxu0 %v515
    %684 = vmatprep.subr.bf16.mxu0 0
    %685 = vmatpush1.bf16.msra.mxu0 %v516
    %686 = vmatprep.subr.bf16.mxu0 0
    %687 = vmatpush1.bf16.msra.mxu0 0
    %688 = vmatprep.subr.bf16.mxu0 0
    %689 = vmatpush1.bf16.msra.mxu0 0
    %690 = vmatprep.subr.bf16.mxu0 0
    %691 = vmatpush1.bf16.msra.mxu0 0
    %692 = vmatprep.subr.bf16.mxu0 0
    %693 = vmatpush1.bf16.msra.mxu0 0
    %694 = vmatprep.mubr.bf16.mxu0 %v627
    %695 = vmatmul.mubr.bf16.gmra.mrb[0].mxu0 %v589
    %v696 = vpop.f32.mrb[0].mxu0
    %v697 = vadd.f32 0.0, %v696
    %v698 = vpop.f32.mrb[0].mxu0
    %v699 = vpop.f32.mrb[0].mxu0
    %v700 = vadd.f32 0.0, %v699
    %v701 = vpop.f32.mrb[0].mxu0
    %702 = vmatprep.mubr.bf16.mxu0 %v630
    %703 = vmatmul.mubr.bf16.gmra.mrb[0].mxu0 %v591
    %v704 = vpop.f32.mrb[0].mxu0
    %v705 = vadd.f32 0.0, %v704
    %v706 = vpop.f32.mrb[0].mxu0
    %v707 = vpop.f32.mrb[0].mxu0
    %v708 = vadd.f32 0.0, %v707
    %v709 = vpop.f32.mrb[0].mxu0
    %710 = vmatprep.mubr.bf16.mxu0 %v633
    %711 = vmatmul.mubr.bf16.gmra.mrb[0].mxu0 %v593
    %v712 = vpop.f32.mrb[0].mxu0
    %v713 = vadd.f32 0.0, %v712
    %v714 = vpop.f32.mrb[0].mxu0
    %v715 = vpop.f32.mrb[0].mxu0
    %v716 = vadd.f32 0.0, %v715
    %v717 = vpop.f32.mrb[0].mxu0
    %718 = vmatprep.mubr.bf16.mxu0 %v636
    %719 = vmatmul.mubr.bf16.gmra.mrb[0].mxu0 %v595
    %v720 = vpop.f32.mrb[0].mxu0
    %v721 = vadd.f32 0.0, %v720
    %v722 = vpop.f32.mrb[0].mxu0
    %v723 = vpop.f32.mrb[0].mxu0
    %v724 = vadd.f32 0.0, %v723
    %v725 = vpop.f32.mrb[0].mxu0
    %726 = vmatprep.mubr.bf16.mxu0 %v639
    %727 = vmatmul.mubr.bf16.gmra.mrb[0].mxu0 %v597
    %v728 = vpop.f32.mrb[0].mxu0
    %v729 = vadd.f32 0.0, %v728
    %v730 = vpop.f32.mrb[0].mxu0
    %v731 = vpop.f32.mrb[0].mxu0
    %v732 = vadd.f32 0.0, %v731
    %v733 = vpop.f32.mrb[0].mxu0
    %734 = vmatprep.mubr.bf16.mxu0 %v642
    %735 = vmatmul.mubr.bf16.gmra.mrb[0].mxu0 %v599
    %v736 = vpop.f32.mrb[0].mxu0
    %v737 = vadd.f32 0.0, %v736
    %v738 = vpop.f32.mrb[0].mxu0
    %v739 = vpop.f32.mrb[0].mxu0
    %v740 = vadd.f32 0.0, %v739
    %v741 = vpop.f32.mrb[0].mxu0
    %742 = vmatprep.mubr.bf16.mxu0 %v645
    %743 = vmatmul.mubr.bf16.gmra.mrb[0].mxu0 %v601
    %v744 = vpop.f32.mrb[0].mxu0
    %v745 = vadd.f32 0.0, %v744
    %v746 = vpop.f32.mrb[0].mxu0
    %v747 = vpop.f32.mrb[0].mxu0
    %v748 = vadd.f32 0.0, %v747
    %v749 = vpop.f32.mrb[0].mxu0
    %750 = vmatprep.mubr.bf16.mxu0 %v648
    %751 = vmatmul.mubr.bf16.gmra.mrb[0].mxu0 %v603
    %v752 = vpop.f32.mrb[0].mxu0
    %v753 = vadd.f32 0.0, %v752
    %v754 = vpop.f32.mrb[0].mxu0
    %v755 = vpop.f32.mrb[0].mxu0
    %v756 = vadd.f32 0.0, %v755
    %v757 = vpop.f32.mrb[0].mxu0
    %758 = vmatprep.mubr.bf16.mxu0 %v651
    %759 = vmatmul.mubr.bf16.gmra.mrb[0].mxu0 %v605
    %v760 = vpop.f32.mrb[0].mxu0
    %v761 = vadd.f32 0.0, %v760
    %v762 = vpop.f32.mrb[0].mxu0
    %v763 = vpop.f32.mrb[0].mxu0
    %v764 = vadd.f32 0.0, %v763
    %v765 = vpop.f32.mrb[0].mxu0
    %766 = vmatprep.mubr.bf16.mxu0 %v654
    %767 = vmatmul.mubr.bf16.gmra.mrb[0].mxu0 %v607
    %v768 = vpop.f32.mrb[0].mxu0
    %v769 = vadd.f32 0.0, %v768
    %v770 = vpop.f32.mrb[0].mxu0
    %v771 = vpop.f32.mrb[0].mxu0
    %v772 = vadd.f32 0.0, %v771
    %v773 = vpop.f32.mrb[0].mxu0
    %774 = vmatprep.mubr.bf16.mxu0 %v657
    %775 = vmatmul.mubr.bf16.gmra.mrb[0].mxu0 %v609
    %v776 = vpop.f32.mrb[0].mxu0
    %v777 = vadd.f32 0.0, %v776
    %v778 = vpop.f32.mrb[0].mxu0
    %v779 = vpop.f32.mrb[0].mxu0
    %v780 = vadd.f32 0.0, %v779
    %v781 = vpop.f32.mrb[0].mxu0
    %782 = vmatprep.mubr.bf16.mxu0 %v660
    %783 = vmatmul.mubr.bf16.gmra.mrb[0].mxu0 %v611
    %v784 = vpop.f32.mrb[0].mxu0
    %v785 = vadd.f32 0.0, %v784
    %v786 = vpop.f32.mrb[0].mxu0
    %v787 = vpop.f32.mrb[0].mxu0
    %v788 = vadd.f32 0.0, %v787
    %v789 = vpop.f32.mrb[0].mxu0
    %790 = vdwg.mxu0
    %v791 = vadd.f32 %v697, %v700
    %v792 = vadd.f32 %v791, %v705
    %v793 = vadd.f32 %v792, %v708
    %v794 = vrot.slane %v793, 4
    %v795 = vadd.f32 %v793, %v794
    %v796 = vrot.slane %v795, 2
    %v797 = vadd.f32 %v795, %v796
    %v798 = vrot.slane %v797, 1
    %v799 = vadd.f32 %v797, %v798
    %v800 = vadd.f32 %v713, %v716
    %v801 = vadd.f32 %v800, %v721
    %v802 = vadd.f32 %v801, %v724
    %v803 = vrot.slane %v802, 4
    %v804 = vadd.f32 %v802, %v803
    %v805 = vrot.slane %v804, 2
    %v806 = vadd.f32 %v804, %v805
    %v807 = vrot.slane %v806, 1
    %v808 = vadd.f32 %v806, %v807
    %v809 = vadd.f32 %v729, %v732
    %v810 = vadd.f32 %v809, %v737
    %v811 = vadd.f32 %v810, %v740
    %v812 = vrot.slane %v811, 4
    %v813 = vadd.f32 %v811, %v812
    %v814 = vrot.slane %v813, 2
    %v815 = vadd.f32 %v813, %v814
    %v816 = vrot.slane %v815, 1
    %v817 = vadd.f32 %v815, %v816
    %v818 = vadd.f32 %v745, %v748
    %v819 = vadd.f32 %v818, %v753
    %v820 = vadd.f32 %v819, %v756
    %v821 = vrot.slane %v820, 4
    %v822 = vadd.f32 %v820, %v821
    %v823 = vrot.slane %v822, 2
    %v824 = vadd.f32 %v822, %v823
    %v825 = vrot.slane %v824, 1
    %v826 = vadd.f32 %v824, %v825
    %v827 = vadd.f32 %v761, %v764
    %v828 = vadd.f32 %v827, %v769
    %v829 = vadd.f32 %v828, %v772
    %v830 = vrot.slane %v829, 4
    %v831 = vadd.f32 %v829, %v830
    %v832 = vrot.slane %v831, 2
    %v833 = vadd.f32 %v831, %v832
    %v834 = vrot.slane %v833, 1
    %v835 = vadd.f32 %v833, %v834
    %v836 = vadd.f32 %v777, %v780
    %v837 = vadd.f32 %v836, %v785
    %v838 = vadd.f32 %v837, %v788
    %v839 = vrot.slane %v838, 4
    %v840 = vadd.f32 %v838, %v839
    %v841 = vrot.slane %v840, 2
    %v842 = vadd.f32 %v840, %v841
    %v843 = vrot.slane %v842, 1
    %v844 = vadd.f32 %v842, %v843
    %v845 = vrcp.pop 32.0
    %v846 = vmul.f32 %v799, %v845
    %v847 = vmul.f32 %v808, %v845
    %v848 = vmul.f32 %v817, %v845
    %v849 = vmul.f32 %v826, %v845
    %v850 = vmul.f32 %v835, %v845
    %v851 = vmul.f32 %v844, %v845
    %v852 = vsub.f32 %v697, %v846
    %v853 = vsub.f32 %v700, %v846
    %v854 = vsub.f32 %v705, %v846
    %v855 = vsub.f32 %v708, %v846
    %v856 = vsub.f32 %v713, %v847
    %v857 = vsub.f32 %v716, %v847
    %v858 = vsub.f32 %v721, %v847
    %v859 = vsub.f32 %v724, %v847
    %v860 = vsub.f32 %v729, %v848
    %v861 = vsub.f32 %v732, %v848
    %v862 = vsub.f32 %v737, %v848
    %v863 = vsub.f32 %v740, %v848
    %v864 = vsub.f32 %v745, %v849
    %v865 = vsub.f32 %v748, %v849
    %v866 = vsub.f32 %v753, %v849
    %v867 = vsub.f32 %v756, %v849
    %v868 = vsub.f32 %v761, %v850
    %v869 = vsub.f32 %v764, %v850
    %v870 = vsub.f32 %v769, %v850
    %v871 = vsub.f32 %v772, %v850
    %v872 = vsub.f32 %v777, %v851
    %v873 = vsub.f32 %v780, %v851
    %v874 = vsub.f32 %v785, %v851
    %v875 = vsub.f32 %v788, %v851
    %v876 = vmul.f32 %v852, %v852
    %v877 = vmul.f32 %v853, %v853
    %v878 = vmul.f32 %v854, %v854
    %v879 = vmul.f32 %v855, %v855
    %v880 = vmul.f32 %v856, %v856
    %v881 = vmul.f32 %v857, %v857
    %v882 = vmul.f32 %v858, %v858
    %v883 = vmul.f32 %v859, %v859
    %v884 = vmul.f32 %v860, %v860
    %v885 = vmul.f32 %v861, %v861
    %v886 = vmul.f32 %v862, %v862
    %v887 = vmul.f32 %v863, %v863
    %v888 = vmul.f32 %v864, %v864
    %v889 = vmul.f32 %v865, %v865
    %v890 = vmul.f32 %v866, %v866
    %v891 = vmul.f32 %v867, %v867
    %v892 = vmul.f32 %v868, %v868
    %v893 = vmul.f32 %v869, %v869
    %v894 = vmul.f32 %v870, %v870
    %v895 = vmul.f32 %v871, %v871
    %v896 = vmul.f32 %v872, %v872
    %v897 = vmul.f32 %v873, %v873
    %v898 = vmul.f32 %v874, %v874
    %v899 = vmul.f32 %v875, %v875
    %v900 = vadd.f32 %v876, %v877
    %v901 = vadd.f32 %v900, %v878
    %v902 = vadd.f32 %v901, %v879
    %v903 = vrot.slane %v902, 4
    %v904 = vadd.f32 %v902, %v903
    %v905 = vrot.slane %v904, 2
    %v906 = vadd.f32 %v904, %v905
    %v907 = vrot.slane %v906, 1
    %v908 = vadd.f32 %v906, %v907
    %v909 = vadd.f32 %v880, %v881
    %v910 = vadd.f32 %v909, %v882
    %v911 = vadd.f32 %v910, %v883
    %v912 = vrot.slane %v911, 4
    %v913 = vadd.f32 %v911, %v912
    %v914 = vrot.slane %v913, 2
    %v915 = vadd.f32 %v913, %v914
    %v916 = vrot.slane %v915, 1
    %v917 = vadd.f32 %v915, %v916
    %v918 = vadd.f32 %v884, %v885
    %v919 = vadd.f32 %v918, %v886
    %v920 = vadd.f32 %v919, %v887
    %v921 = vrot.slane %v920, 4
    %v922 = vadd.f32 %v920, %v921
    %v923 = vrot.slane %v922, 2
    %v924 = vadd.f32 %v922, %v923
    %v925 = vrot.slane %v924, 1
    %v926 = vadd.f32 %v924, %v925
    %v927 = vadd.f32 %v888, %v889
    %v928 = vadd.f32 %v927, %v890
    %v929 = vadd.f32 %v928, %v891
    %v930 = vrot.slane %v929, 4
    %v931 = vadd.f32 %v929, %v930
    %v932 = vrot.slane %v931, 2
    %v933 = vadd.f32 %v931, %v932
    %v934 = vrot.slane %v933, 1
    %v935 = vadd.f32 %v933, %v934
    %v936 = vadd.f32 %v892, %v893
    %v937 = vadd.f32 %v936, %v894
    %v938 = vadd.f32 %v937, %v895
    %v939 = vrot.slane %v938, 4
    %v940 = vadd.f32 %v938, %v939
    %v941 = vrot.slane %v940, 2
    %v942 = vadd.f32 %v940, %v941
    %v943 = vrot.slane %v942, 1
    %v944 = vadd.f32 %v942, %v943
    %v945 = vadd.f32 %v896, %v897
    %v946 = vadd.f32 %v945, %v898
    %v947 = vadd.f32 %v946, %v899
    %v948 = vrot.slane %v947, 4
    %v949 = vadd.f32 %v947, %v948
    %v950 = vrot.slane %v949, 2
    %v951 = vadd.f32 %v949, %v950
    %v952 = vrot.slane %v951, 1
    %v953 = vadd.f32 %v951, %v952
    %v954 = vmul.f32 %v908, %v845
    %v955 = vmul.f32 %v917, %v845
    %v956 = vmul.f32 %v926, %v845
    %v957 = vmul.f32 %v935, %v845
    %v958 = vmul.f32 %v944, %v845
    %v959 = vmul.f32 %v953, %v845
    %v960 = vadd.f32 %v954, 1e-05
    %v961 = vadd.f32 %v955, 1e-05
    %v962 = vadd.f32 %v956, 1e-05
    %v963 = vadd.f32 %v957, 1e-05
    %v964 = vadd.f32 %v958, 1e-05
    %v965 = vadd.f32 %v959, 1e-05
    %v966 = vrsqrt.pop %v960
    %v967 = vrsqrt.pop %v961
    %v968 = vrsqrt.pop %v962
    %v969 = vrsqrt.pop %v963
    %v970 = vrsqrt.pop %v964
    %v971 = vrsqrt.pop %v965
    %v972 = vmul.f32 %v852, %v966
    %v973 = vmul.f32 %v853, %v966
    %v974 = vmul.f32 %v854, %v966
    %v975 = vmul.f32 %v855, %v966
    %v976 = vmul.f32 %v856, %v967
    %v977 = vmul.f32 %v857, %v967
    %v978 = vmul.f32 %v858, %v967
    %v979 = vmul.f32 %v859, %v967
    %v980 = vmul.f32 %v860, %v968
    %v981 = vmul.f32 %v861, %v968
    %v982 = vmul.f32 %v862, %v968
    %v983 = vmul.f32 %v863, %v968
    %v984 = vmul.f32 %v864, %v969
    %v985 = vmul.f32 %v865, %v969
    %v986 = vmul.f32 %v866, %v969
    %v987 = vmul.f32 %v867, %v969
    %v988 = vmul.f32 %v868, %v970
    %v989 = vmul.f32 %v869, %v970
    %v990 = vmul.f32 %v870, %v970
    %v991 = vmul.f32 %v871, %v970
    %v992 = vmul.f32 %v872, %v971
    %v993 = vmul.f32 %v873, %v971
    %v994 = vmul.f32 %v874, %v971
    %v995 = vmul.f32 %v875, %v971
    %v996 = vld [vmem:[%s4] sm:$0xff]
    %v997 = vld [vmem:[%s4 + $0x8] sm:$0xff]
    %v998 = vld [vmem:[%s4 + $0x10] sm:$0xff]
    %v999 = vld [vmem:[%s4 + $0x18] sm:$0xff]
    %v1000 = vld [vmem:[%s4 + $0x20] sm:$0xff]
    %v1001 = vld [vmem:[%s4 + $0x28] sm:$0xff]
    %v1002 = vld [vmem:[%s4 + $0x30] sm:$0xff]
    %v1003 = vld [vmem:[%s4 + $0x38] sm:$0xff]
    %v1004 = vld [vmem:[%s4 + $0x40] sm:$0xff]
    %v1005 = vld [vmem:[%s4 + $0x48] sm:$0xff]
    %v1006 = vld [vmem:[%s4 + $0x50] sm:$0xff]
    %v1007 = vld [vmem:[%s4 + $0x58] sm:$0xff]
    %v1008 = vld [vmem:[%s4 + $0x60] sm:$0xff]
    %v1009 = vld [vmem:[%s4 + $0x68] sm:$0xff]
    %v1010 = vld [vmem:[%s4 + $0x70] sm:$0xff]
    %v1011 = vld [vmem:[%s4 + $0x78] sm:$0xff]
    %v1012 = vld [vmem:[%s4 + $0x80] sm:$0xff]
    %v1013 = vld [vmem:[%s4 + $0x88] sm:$0xff]
    %v1014 = vld [vmem:[%s4 + $0x90] sm:$0xff]
    %v1015 = vld [vmem:[%s4 + $0x98] sm:$0xff]
    %v1016 = vld [vmem:[%s4 + $0xa0] sm:$0xff]
    %v1017 = vld [vmem:[%s4 + $0xa8] sm:$0xff]
    %v1018 = vld [vmem:[%s4 + $0xb0] sm:$0xff]
    %v1019 = vld [vmem:[%s4 + $0xb8] sm:$0xff]
    %1021 = vset.pattern.permute.xlu0 0
    %1022 = vperm.xlu0 %1021, %v996
    %v1023 = vpop.permute.xlu0 %1022
    %1026 = vset.pattern.permute.xlu0 0
    %1027 = vperm.xlu0 %1026, %v997
    %v1028 = vpop.permute.xlu0 %1027
    %1031 = vset.pattern.permute.xlu0 0
    %1032 = vperm.xlu0 %1031, %v998
    %v1033 = vpop.permute.xlu0 %1032
    %1036 = vset.pattern.permute.xlu0 0
    %1037 = vperm.xlu0 %1036, %v999
    %v1038 = vpop.permute.xlu0 %1037
    %1041 = vset.pattern.permute.xlu0 0
    %1042 = vperm.xlu0 %1041, %v1000
    %v1043 = vpop.permute.xlu0 %1042
    %1046 = vset.pattern.permute.xlu0 0
    %1047 = vperm.xlu0 %1046, %v1001
    %v1048 = vpop.permute.xlu0 %1047
    %1051 = vset.pattern.permute.xlu0 0
    %1052 = vperm.xlu0 %1051, %v1002
    %v1053 = vpop.permute.xlu0 %1052
    %1056 = vset.pattern.permute.xlu0 0
    %1057 = vperm.xlu0 %1056, %v1003
    %v1058 = vpop.permute.xlu0 %1057
    %1061 = vset.pattern.permute.xlu0 0
    %1062 = vperm.xlu0 %1061, %v1004
    %v1063 = vpop.permute.xlu0 %1062
    %1066 = vset.pattern.permute.xlu0 0
    %1067 = vperm.xlu0 %1066, %v1005
    %v1068 = vpop.permute.xlu0 %1067
    %1071 = vset.pattern.permute.xlu0 0
    %1072 = vperm.xlu0 %1071, %v1006
    %v1073 = vpop.permute.xlu0 %1072
    %1076 = vset.pattern.permute.xlu0 0
    %1077 = vperm.xlu0 %1076, %v1007
    %v1078 = vpop.permute.xlu0 %1077
    %1081 = vset.pattern.permute.xlu0 0
    %1082 = vperm.xlu0 %1081, %v1008
    %v1083 = vpop.permute.xlu0 %1082
    %1086 = vset.pattern.permute.xlu0 0
    %1087 = vperm.xlu0 %1086, %v1009
    %v1088 = vpop.permute.xlu0 %1087
    %1091 = vset.pattern.permute.xlu0 0
    %1092 = vperm.xlu0 %1091, %v1010
    %v1093 = vpop.permute.xlu0 %1092
    %1096 = vset.pattern.permute.xlu0 0
    %1097 = vperm.xlu0 %1096, %v1011
    %v1098 = vpop.permute.xlu0 %1097
    %1101 = vset.pattern.permute.xlu0 0
    %1102 = vperm.xlu0 %1101, %v1012
    %v1103 = vpop.permute.xlu0 %1102
    %1106 = vset.pattern.permute.xlu0 0
    %1107 = vperm.xlu0 %1106, %v1013
    %v1108 = vpop.permute.xlu0 %1107
    %1111 = vset.pattern.permute.xlu0 0
    %1112 = vperm.xlu0 %1111, %v1014
    %v1113 = vpop.permute.xlu0 %1112
    %1116 = vset.pattern.permute.xlu0 0
    %1117 = vperm.xlu0 %1116, %v1015
    %v1118 = vpop.permute.xlu0 %1117
    %1121 = vset.pattern.permute.xlu0 0
    %1122 = vperm.xlu0 %1121, %v1016
    %v1123 = vpop.permute.xlu0 %1122
    %1126 = vset.pattern.permute.xlu0 0
    %1127 = vperm.xlu0 %1126, %v1017
    %v1128 = vpop.permute.xlu0 %1127
    %1131 = vset.pattern.permute.xlu0 0
    %1132 = vperm.xlu0 %1131, %v1018
    %v1133 = vpop.permute.xlu0 %1132
    %1136 = vset.pattern.permute.xlu0 0
    %1137 = vperm.xlu0 %1136, %v1019
    %v1138 = vpop.permute.xlu0 %1137
    %v1140 = vmul.f32 %v972, %v1023
    %v1141 = vmul.f32 %v973, %v1028
    %v1142 = vmul.f32 %v974, %v1033
    %v1143 = vmul.f32 %v975, %v1038
    %v1144 = vmul.f32 %v976, %v1043
    %v1145 = vmul.f32 %v977, %v1048
    %v1146 = vmul.f32 %v978, %v1053
    %v1147 = vmul.f32 %v979, %v1058
    %v1148 = vmul.f32 %v980, %v1063
    %v1149 = vmul.f32 %v981, %v1068
    %v1150 = vmul.f32 %v982, %v1073
    %v1151 = vmul.f32 %v983, %v1078
    %v1152 = vmul.f32 %v984, %v1083
    %v1153 = vmul.f32 %v985, %v1088
    %v1154 = vmul.f32 %v986, %v1093
    %v1155 = vmul.f32 %v987, %v1098
    %v1156 = vmul.f32 %v988, %v1103
    %v1157 = vmul.f32 %v989, %v1108
    %v1158 = vmul.f32 %v990, %v1113
    %v1159 = vmul.f32 %v991, %v1118
    %v1160 = vmul.f32 %v992, %v1123
    %v1161 = vmul.f32 %v993, %v1128
    %v1162 = vmul.f32 %v994, %v1133
    %v1163 = vmul.f32 %v995, %v1138
    %v1164 = vld [vmem:[%s5] sm:$0xff]
    %v1165 = vld [vmem:[%s5 + $0x8] sm:$0xff]
    %v1166 = vld [vmem:[%s5 + $0x10] sm:$0xff]
    %v1167 = vld [vmem:[%s5 + $0x18] sm:$0xff]
    %v1168 = vld [vmem:[%s5 + $0x20] sm:$0xff]
    %v1169 = vld [vmem:[%s5 + $0x28] sm:$0xff]
    %v1170 = vld [vmem:[%s5 + $0x30] sm:$0xff]
    %v1171 = vld [vmem:[%s5 + $0x38] sm:$0xff]
    %v1172 = vld [vmem:[%s5 + $0x40] sm:$0xff]
    %v1173 = vld [vmem:[%s5 + $0x48] sm:$0xff]
    %v1174 = vld [vmem:[%s5 + $0x50] sm:$0xff]
    %v1175 = vld [vmem:[%s5 + $0x58] sm:$0xff]
    %v1176 = vld [vmem:[%s5 + $0x60] sm:$0xff]
    %v1177 = vld [vmem:[%s5 + $0x68] sm:$0xff]
    %v1178 = vld [vmem:[%s5 + $0x70] sm:$0xff]
    %v1179 = vld [vmem:[%s5 + $0x78] sm:$0xff]
    %v1180 = vld [vmem:[%s5 + $0x80] sm:$0xff]
    %v1181 = vld [vmem:[%s5 + $0x88] sm:$0xff]
    %v1182 = vld [vmem:[%s5 + $0x90] sm:$0xff]
    %v1183 = vld [vmem:[%s5 + $0x98] sm:$0xff]
    %v1184 = vld [vmem:[%s5 + $0xa0] sm:$0xff]
    %v1185 = vld [vmem:[%s5 + $0xa8] sm:$0xff]
    %v1186 = vld [vmem:[%s5 + $0xb0] sm:$0xff]
    %v1187 = vld [vmem:[%s5 + $0xb8] sm:$0xff]
    %1189 = vset.pattern.permute.xlu0 0
    %1190 = vperm.xlu0 %1189, %v1164
    %v1191 = vpop.permute.xlu0 %1190
    %1194 = vset.pattern.permute.xlu0 0
    %1195 = vperm.xlu0 %1194, %v1165
    %v1196 = vpop.permute.xlu0 %1195
    %1199 = vset.pattern.permute.xlu0 0
    %1200 = vperm.xlu0 %1199, %v1166
    %v1201 = vpop.permute.xlu0 %1200
    %1204 = vset.pattern.permute.xlu0 0
    %1205 = vperm.xlu0 %1204, %v1167
    %v1206 = vpop.permute.xlu0 %1205
    %1209 = vset.pattern.permute.xlu0 0
    %1210 = vperm.xlu0 %1209, %v1168
    %v1211 = vpop.permute.xlu0 %1210
    %1214 = vset.pattern.permute.xlu0 0
    %1215 = vperm.xlu0 %1214, %v1169
    %v1216 = vpop.permute.xlu0 %1215
    %1219 = vset.pattern.permute.xlu0 0
    %1220 = vperm.xlu0 %1219, %v1170
    %v1221 = vpop.permute.xlu0 %1220
    %1224 = vset.pattern.permute.xlu0 0
    %1225 = vperm.xlu0 %1224, %v1171
    %v1226 = vpop.permute.xlu0 %1225
    %1229 = vset.pattern.permute.xlu0 0
    %1230 = vperm.xlu0 %1229, %v1172
    %v1231 = vpop.permute.xlu0 %1230
    %1234 = vset.pattern.permute.xlu0 0
    %1235 = vperm.xlu0 %1234, %v1173
    %v1236 = vpop.permute.xlu0 %1235
    %1239 = vset.pattern.permute.xlu0 0
    %1240 = vperm.xlu0 %1239, %v1174
    %v1241 = vpop.permute.xlu0 %1240
    %1244 = vset.pattern.permute.xlu0 0
    %1245 = vperm.xlu0 %1244, %v1175
    %v1246 = vpop.permute.xlu0 %1245
    %1249 = vset.pattern.permute.xlu0 0
    %1250 = vperm.xlu0 %1249, %v1176
    %v1251 = vpop.permute.xlu0 %1250
    %1254 = vset.pattern.permute.xlu0 0
    %1255 = vperm.xlu0 %1254, %v1177
    %v1256 = vpop.permute.xlu0 %1255
    %1259 = vset.pattern.permute.xlu0 0
    %1260 = vperm.xlu0 %1259, %v1178
    %v1261 = vpop.permute.xlu0 %1260
    %1264 = vset.pattern.permute.xlu0 0
    %1265 = vperm.xlu0 %1264, %v1179
    %v1266 = vpop.permute.xlu0 %1265
    %1269 = vset.pattern.permute.xlu0 0
    %1270 = vperm.xlu0 %1269, %v1180
    %v1271 = vpop.permute.xlu0 %1270
    %1274 = vset.pattern.permute.xlu0 0
    %1275 = vperm.xlu0 %1274, %v1181
    %v1276 = vpop.permute.xlu0 %1275
    %1279 = vset.pattern.permute.xlu0 0
    %1280 = vperm.xlu0 %1279, %v1182
    %v1281 = vpop.permute.xlu0 %1280
    %1284 = vset.pattern.permute.xlu0 0
    %1285 = vperm.xlu0 %1284, %v1183
    %v1286 = vpop.permute.xlu0 %1285
    %1289 = vset.pattern.permute.xlu0 0
    %1290 = vperm.xlu0 %1289, %v1184
    %v1291 = vpop.permute.xlu0 %1290
    %1294 = vset.pattern.permute.xlu0 0
    %1295 = vperm.xlu0 %1294, %v1185
    %v1296 = vpop.permute.xlu0 %1295
    %1299 = vset.pattern.permute.xlu0 0
    %1300 = vperm.xlu0 %1299, %v1186
    %v1301 = vpop.permute.xlu0 %1300
    %1304 = vset.pattern.permute.xlu0 0
    %1305 = vperm.xlu0 %1304, %v1187
    %v1306 = vpop.permute.xlu0 %1305
    %v1308 = vadd.f32 %v1140, %v1191
    %v1309 = vadd.f32 %v1141, %v1196
    %v1310 = vadd.f32 %v1142, %v1201
    %v1311 = vadd.f32 %v1143, %v1206
    %v1312 = vadd.f32 %v1144, %v1211
    %v1313 = vadd.f32 %v1145, %v1216
    %v1314 = vadd.f32 %v1146, %v1221
    %v1315 = vadd.f32 %v1147, %v1226
    %v1316 = vadd.f32 %v1148, %v1231
    %v1317 = vadd.f32 %v1149, %v1236
    %v1318 = vadd.f32 %v1150, %v1241
    %v1319 = vadd.f32 %v1151, %v1246
    %v1320 = vadd.f32 %v1152, %v1251
    %v1321 = vadd.f32 %v1153, %v1256
    %v1322 = vadd.f32 %v1154, %v1261
    %v1323 = vadd.f32 %v1155, %v1266
    %v1324 = vadd.f32 %v1156, %v1271
    %v1325 = vadd.f32 %v1157, %v1276
    %v1326 = vadd.f32 %v1158, %v1281
    %v1327 = vadd.f32 %v1159, %v1286
    %v1328 = vadd.f32 %v1160, %v1291
    %v1329 = vadd.f32 %v1161, %v1296
    %v1330 = vadd.f32 %v1162, %v1301
    %v1331 = vadd.f32 %v1163, %v1306
    %v1332 = vmax.f32 %v1308, 0.0
    %v1333 = vmax.f32 %v1309, 0.0
    %v1334 = vmax.f32 %v1310, 0.0
    %v1335 = vmax.f32 %v1311, 0.0
    %v1336 = vmax.f32 %v1312, 0.0
    %v1337 = vmax.f32 %v1313, 0.0
    %v1338 = vmax.f32 %v1314, 0.0
    %v1339 = vmax.f32 %v1315, 0.0
    %v1340 = vmax.f32 %v1316, 0.0
    %v1341 = vmax.f32 %v1317, 0.0
    %v1342 = vmax.f32 %v1318, 0.0
    %v1343 = vmax.f32 %v1319, 0.0
    %v1344 = vmax.f32 %v1320, 0.0
    %v1345 = vmax.f32 %v1321, 0.0
    %v1346 = vmax.f32 %v1322, 0.0
    %v1347 = vmax.f32 %v1323, 0.0
    %v1348 = vmax.f32 %v1324, 0.0
    %v1349 = vmax.f32 %v1325, 0.0
    %v1350 = vmax.f32 %v1326, 0.0
    %v1351 = vmax.f32 %v1327, 0.0
    %v1352 = vmax.f32 %v1328, 0.0
    %v1353 = vmax.f32 %v1329, 0.0
    %v1354 = vmax.f32 %v1330, 0.0
    %v1355 = vmax.f32 %v1331, 0.0
    %v1356 = vadd.f32 %v457, %v1332
    %v1357 = vadd.f32 %v458, %v1333
    %v1358 = vadd.f32 %v459, %v1334
    %v1359 = vadd.f32 %v460, %v1335
    %v1360 = vadd.f32 %v461, %v1336
    %v1361 = vadd.f32 %v462, %v1337
    %v1362 = vadd.f32 %v463, %v1338
    %v1363 = vadd.f32 %v464, %v1339
    %v1364 = vadd.f32 %v465, %v1340
    %v1365 = vadd.f32 %v466, %v1341
    %v1366 = vadd.f32 %v467, %v1342
    %v1367 = vadd.f32 %v468, %v1343
    %v1368 = vadd.f32 %v469, %v1344
    %v1369 = vadd.f32 %v470, %v1345
    %v1370 = vadd.f32 %v471, %v1346
    %v1371 = vadd.f32 %v472, %v1347
    %v1372 = vadd.f32 %v473, %v1348
    %v1373 = vadd.f32 %v474, %v1349
    %v1374 = vadd.f32 %v475, %v1350
    %v1375 = vadd.f32 %v476, %v1351
    %v1376 = vadd.f32 %v477, %v1352
    %v1377 = vadd.f32 %v478, %v1353
    %v1378 = vadd.f32 %v479, %v1354
    %v1379 = vadd.f32 %v480, %v1355
    %s1380 = scalar_lea.vmem %s3, 192
    %v1381 = vld [vmem:[%s1380] sm:$0xff]
    %v1382 = vld [vmem:[%s1380 + $0x8] sm:$0xff]
    %v1383 = vld [vmem:[%s1380 + $0x10] sm:$0xff]
    %v1384 = vld [vmem:[%s1380 + $0x18] sm:$0xff]
    %v1385 = vld [vmem:[%s1380 + $0x20] sm:$0xff]
    %v1386 = vld [vmem:[%s1380 + $0x28] sm:$0xff]
    %v1387 = vld [vmem:[%s1380 + $0x30] sm:$0xff]
    %v1388 = vld [vmem:[%s1380 + $0x38] sm:$0xff]
    %v1389 = vld [vmem:[%s1380 + $0x40] sm:$0xff]
    %v1390 = vld [vmem:[%s1380 + $0x48] sm:$0xff]
    %v1391 = vld [vmem:[%s1380 + $0x50] sm:$0xff]
    %v1392 = vld [vmem:[%s1380 + $0x58] sm:$0xff]
    %v1393 = vld [vmem:[%s1380 + $0x60] sm:$0xff]
    %v1394 = vld [vmem:[%s1380 + $0x68] sm:$0xff]
    %v1395 = vld [vmem:[%s1380 + $0x70] sm:$0xff]
    %v1396 = vld [vmem:[%s1380 + $0x78] sm:$0xff]
    %v1397 = vld [vmem:[%s1380 + $0x80] sm:$0xff]
    %v1398 = vld [vmem:[%s1380 + $0x88] sm:$0xff]
    %v1399 = vld [vmem:[%s1380 + $0x90] sm:$0xff]
    %v1400 = vld [vmem:[%s1380 + $0x98] sm:$0xff]
    %v1401 = vld [vmem:[%s1380 + $0xa0] sm:$0xff]
    %v1402 = vld [vmem:[%s1380 + $0xa8] sm:$0xff]
    %v1403 = vld [vmem:[%s1380 + $0xb0] sm:$0xff]
    %v1404 = vld [vmem:[%s1380 + $0xb8] sm:$0xff]
    %v1405 = vpack.c.bf16 %v1357, %v1356
    %v1406 = vpack.c.bf16 %v1359, %v1358
    %v1407 = vpack.c.bf16 %v1361, %v1360
    %v1408 = vpack.c.bf16 %v1363, %v1362
    %v1409 = vpack.c.bf16 %v1365, %v1364
    %v1410 = vpack.c.bf16 %v1367, %v1366
    %v1411 = vpack.c.bf16 %v1369, %v1368
    %v1412 = vpack.c.bf16 %v1371, %v1370
    %v1413 = vpack.c.bf16 %v1373, %v1372
    %v1414 = vpack.c.bf16 %v1375, %v1374
    %v1415 = vpack.c.bf16 %v1377, %v1376
    %v1416 = vpack.c.bf16 %v1379, %v1378
    %v1441 = vunpack.c.l.b16 %v1381
    %v1442 = vunpack.c.h.b16 %v1381
    %v1443 = vunpack.c.l.b16 %v1382
    %v1444 = vunpack.c.h.b16 %v1382
    %v1445 = vunpack.c.l.b16 %v1383
    %v1446 = vunpack.c.h.b16 %v1383
    %v1447 = vunpack.c.l.b16 %v1384
    %v1448 = vunpack.c.h.b16 %v1384
    %v1449 = vunpack.c.l.b16 %v1385
    %v1450 = vunpack.c.h.b16 %v1385
    %v1451 = vunpack.c.l.b16 %v1386
    %v1452 = vunpack.c.h.b16 %v1386
    %v1453 = vunpack.c.l.b16 %v1387
    %v1454 = vunpack.c.h.b16 %v1387
    %v1455 = vunpack.c.l.b16 %v1388
    %v1456 = vunpack.c.h.b16 %v1388
    %v1457 = vunpack.c.l.b16 %v1389
    %v1458 = vunpack.c.h.b16 %v1389
    %v1459 = vunpack.c.l.b16 %v1390
    %v1460 = vunpack.c.h.b16 %v1390
    %v1461 = vunpack.c.l.b16 %v1391
    %v1462 = vunpack.c.h.b16 %v1391
    %v1463 = vunpack.c.l.b16 %v1392
    %v1464 = vunpack.c.h.b16 %v1392
    %v1465 = vunpack.c.l.b16 %v1393
    %v1466 = vunpack.c.h.b16 %v1393
    %v1467 = vunpack.c.l.b16 %v1394
    %v1468 = vunpack.c.h.b16 %v1394
    %v1469 = vunpack.c.l.b16 %v1395
    %v1470 = vunpack.c.h.b16 %v1395
    %v1471 = vunpack.c.l.b16 %v1396
    %v1472 = vunpack.c.h.b16 %v1396
    %v1473 = vunpack.c.l.b16 %v1397
    %v1474 = vunpack.c.h.b16 %v1397
    %v1475 = vunpack.c.l.b16 %v1398
    %v1476 = vunpack.c.h.b16 %v1398
    %v1477 = vunpack.c.l.b16 %v1399
    %v1478 = vunpack.c.h.b16 %v1399
    %v1479 = vunpack.c.l.b16 %v1400
    %v1480 = vunpack.c.h.b16 %v1400
    %v1481 = vunpack.c.l.b16 %v1401
    %v1482 = vunpack.c.h.b16 %v1401
    %v1483 = vunpack.c.l.b16 %v1402
    %v1484 = vunpack.c.h.b16 %v1402
    %v1485 = vunpack.c.l.b16 %v1403
    %v1486 = vunpack.c.h.b16 %v1403
    %v1487 = vunpack.c.l.b16 %v1404
    %v1488 = vunpack.c.h.b16 %v1404
    %v1489 = vpack.c.b16 %v1443, %v1441
    %v1490 = vpack.c.b16 %v1444, %v1442
    %v1491 = vpack.c.b16 %v1447, %v1445
    %v1492 = vpack.c.b16 %v1448, %v1446
    %v1493 = vpack.c.b16 %v1451, %v1449
    %v1494 = vpack.c.b16 %v1452, %v1450
    %v1495 = vpack.c.b16 %v1455, %v1453
    %v1496 = vpack.c.b16 %v1456, %v1454
    %v1497 = vpack.c.b16 %v1459, %v1457
    %v1498 = vpack.c.b16 %v1460, %v1458
    %v1499 = vpack.c.b16 %v1463, %v1461
    %v1500 = vpack.c.b16 %v1464, %v1462
    %v1501 = vpack.c.b16 %v1467, %v1465
    %v1502 = vpack.c.b16 %v1468, %v1466
    %v1503 = vpack.c.b16 %v1471, %v1469
    %v1504 = vpack.c.b16 %v1472, %v1470
    %v1505 = vpack.c.b16 %v1475, %v1473
    %v1506 = vpack.c.b16 %v1476, %v1474
    %v1507 = vpack.c.b16 %v1479, %v1477
    %v1508 = vpack.c.b16 %v1480, %v1478
    %v1509 = vpack.c.b16 %v1483, %v1481
    %v1510 = vpack.c.b16 %v1484, %v1482
    %v1511 = vpack.c.b16 %v1487, %v1485
    %v1512 = vpack.c.b16 %v1488, %v1486
    %v1526 = vsel %vm625, %v1490, 0
    %v1529 = vsel %vm625, %v1492, 0
    %v1532 = vsel %vm625, %v1494, 0
    %v1535 = vsel %vm625, %v1496, 0
    %v1538 = vsel %vm625, %v1498, 0
    %v1541 = vsel %vm625, %v1500, 0
    %v1544 = vsel %vm625, %v1502, 0
    %v1547 = vsel %vm625, %v1504, 0
    %v1550 = vsel %vm625, %v1506, 0
    %v1553 = vsel %vm625, %v1508, 0
    %v1556 = vsel %vm625, %v1510, 0
    %v1559 = vsel %vm625, %v1512, 0
    %1561 = vmatprep.subr.bf16.mxu0 0
    %1562 = vmatpush1.bf16.msra.mxu0 %v1405
    %1563 = vmatprep.subr.bf16.mxu0 0
    %1564 = vmatpush1.bf16.msra.mxu0 %v1406
    %1565 = vmatprep.subr.bf16.mxu0 0
    %1566 = vmatpush1.bf16.msra.mxu0 %v1407
    %1567 = vmatprep.subr.bf16.mxu0 0
    %1568 = vmatpush1.bf16.msra.mxu0 %v1408
    %1569 = vmatprep.subr.bf16.mxu0 0
    %1570 = vmatpush1.bf16.msra.mxu0 %v1409
    %1571 = vmatprep.subr.bf16.mxu0 0
    %1572 = vmatpush1.bf16.msra.mxu0 %v1410
    %1573 = vmatprep.subr.bf16.mxu0 0
    %1574 = vmatpush1.bf16.msra.mxu0 %v1411
    %1575 = vmatprep.subr.bf16.mxu0 0
    %1576 = vmatpush1.bf16.msra.mxu0 %v1412
    %1577 = vmatprep.subr.bf16.mxu0 0
    %1578 = vmatpush1.bf16.msra.mxu0 %v1413
    %1579 = vmatprep.subr.bf16.mxu0 0
    %1580 = vmatpush1.bf16.msra.mxu0 %v1414
    %1581 = vmatprep.subr.bf16.mxu0 0
    %1582 = vmatpush1.bf16.msra.mxu0 %v1415
    %1583 = vmatprep.subr.bf16.mxu0 0
    %1584 = vmatpush1.bf16.msra.mxu0 %v1416
    %1585 = vmatprep.subr.bf16.mxu0 0
    %1586 = vmatpush1.bf16.msra.mxu0 0
    %1587 = vmatprep.subr.bf16.mxu0 0
    %1588 = vmatpush1.bf16.msra.mxu0 0
    %1589 = vmatprep.subr.bf16.mxu0 0
    %1590 = vmatpush1.bf16.msra.mxu0 0
    %1591 = vmatprep.subr.bf16.mxu0 0
    %1592 = vmatpush1.bf16.msra.mxu0 0
    %1593 = vmatprep.mubr.bf16.mxu0 %v1526
    %1594 = vmatmul.mubr.bf16.gmra.mrb[0].mxu0 %v1489
    %v1595 = vpop.f32.mrb[0].mxu0
    %v1596 = vadd.f32 0.0, %v1595
    %v1597 = vpop.f32.mrb[0].mxu0
    %v1598 = vpop.f32.mrb[0].mxu0
    %v1599 = vadd.f32 0.0, %v1598
    %v1600 = vpop.f32.mrb[0].mxu0
    %1601 = vmatprep.mubr.bf16.mxu0 %v1529
    %1602 = vmatmul.mubr.bf16.gmra.mrb[0].mxu0 %v1491
    %v1603 = vpop.f32.mrb[0].mxu0
    %v1604 = vadd.f32 0.0, %v1603
    %v1605 = vpop.f32.mrb[0].mxu0
    %v1606 = vpop.f32.mrb[0].mxu0
    %v1607 = vadd.f32 0.0, %v1606
    %v1608 = vpop.f32.mrb[0].mxu0
    %1609 = vmatprep.mubr.bf16.mxu0 %v1532
    %1610 = vmatmul.mubr.bf16.gmra.mrb[0].mxu0 %v1493
    %v1611 = vpop.f32.mrb[0].mxu0
    %v1612 = vadd.f32 0.0, %v1611
    %v1613 = vpop.f32.mrb[0].mxu0
    %v1614 = vpop.f32.mrb[0].mxu0
    %v1615 = vadd.f32 0.0, %v1614
    %v1616 = vpop.f32.mrb[0].mxu0
    %1617 = vmatprep.mubr.bf16.mxu0 %v1535
    %1618 = vmatmul.mubr.bf16.gmra.mrb[0].mxu0 %v1495
    %v1619 = vpop.f32.mrb[0].mxu0
    %v1620 = vadd.f32 0.0, %v1619
    %v1621 = vpop.f32.mrb[0].mxu0
    %v1622 = vpop.f32.mrb[0].mxu0
    %v1623 = vadd.f32 0.0, %v1622
    %v1624 = vpop.f32.mrb[0].mxu0
    %1625 = vmatprep.mubr.bf16.mxu0 %v1538
    %1626 = vmatmul.mubr.bf16.gmra.mrb[0].mxu0 %v1497
    %v1627 = vpop.f32.mrb[0].mxu0
    %v1628 = vadd.f32 0.0, %v1627
    %v1629 = vpop.f32.mrb[0].mxu0
    %v1630 = vpop.f32.mrb[0].mxu0
    %v1631 = vadd.f32 0.0, %v1630
    %v1632 = vpop.f32.mrb[0].mxu0
    %1633 = vmatprep.mubr.bf16.mxu0 %v1541
    %1634 = vmatmul.mubr.bf16.gmra.mrb[0].mxu0 %v1499
    %v1635 = vpop.f32.mrb[0].mxu0
    %v1636 = vadd.f32 0.0, %v1635
    %v1637 = vpop.f32.mrb[0].mxu0
    %v1638 = vpop.f32.mrb[0].mxu0
    %v1639 = vadd.f32 0.0, %v1638
    %v1640 = vpop.f32.mrb[0].mxu0
    %1641 = vmatprep.mubr.bf16.mxu0 %v1544
    %1642 = vmatmul.mubr.bf16.gmra.mrb[0].mxu0 %v1501
    %v1643 = vpop.f32.mrb[0].mxu0
    %v1644 = vadd.f32 0.0, %v1643
    %v1645 = vpop.f32.mrb[0].mxu0
    %v1646 = vpop.f32.mrb[0].mxu0
    %v1647 = vadd.f32 0.0, %v1646
    %v1648 = vpop.f32.mrb[0].mxu0
    %1649 = vmatprep.mubr.bf16.mxu0 %v1547
    %1650 = vmatmul.mubr.bf16.gmra.mrb[0].mxu0 %v1503
    %v1651 = vpop.f32.mrb[0].mxu0
    %v1652 = vadd.f32 0.0, %v1651
    %v1653 = vpop.f32.mrb[0].mxu0
    %v1654 = vpop.f32.mrb[0].mxu0
    %v1655 = vadd.f32 0.0, %v1654
    %v1656 = vpop.f32.mrb[0].mxu0
    %1657 = vmatprep.mubr.bf16.mxu0 %v1550
    %1658 = vmatmul.mubr.bf16.gmra.mrb[0].mxu0 %v1505
    %v1659 = vpop.f32.mrb[0].mxu0
    %v1660 = vadd.f32 0.0, %v1659
    %v1661 = vpop.f32.mrb[0].mxu0
    %v1662 = vpop.f32.mrb[0].mxu0
    %v1663 = vadd.f32 0.0, %v1662
    %v1664 = vpop.f32.mrb[0].mxu0
    %1665 = vmatprep.mubr.bf16.mxu0 %v1553
    %1666 = vmatmul.mubr.bf16.gmra.mrb[0].mxu0 %v1507
    %v1667 = vpop.f32.mrb[0].mxu0
    %v1668 = vadd.f32 0.0, %v1667
    %v1669 = vpop.f32.mrb[0].mxu0
    %v1670 = vpop.f32.mrb[0].mxu0
    %v1671 = vadd.f32 0.0, %v1670
    %v1672 = vpop.f32.mrb[0].mxu0
    %1673 = vmatprep.mubr.bf16.mxu0 %v1556
    %1674 = vmatmul.mubr.bf16.gmra.mrb[0].mxu0 %v1509
    %v1675 = vpop.f32.mrb[0].mxu0
    %v1676 = vadd.f32 0.0, %v1675
    %v1677 = vpop.f32.mrb[0].mxu0
    %v1678 = vpop.f32.mrb[0].mxu0
    %v1679 = vadd.f32 0.0, %v1678
    %v1680 = vpop.f32.mrb[0].mxu0
    %1681 = vmatprep.mubr.bf16.mxu0 %v1559
    %1682 = vmatmul.mubr.bf16.gmra.mrb[0].mxu0 %v1511
    %v1683 = vpop.f32.mrb[0].mxu0
    %v1684 = vadd.f32 0.0, %v1683
    %v1685 = vpop.f32.mrb[0].mxu0
    %v1686 = vpop.f32.mrb[0].mxu0
    %v1687 = vadd.f32 0.0, %v1686
    %v1688 = vpop.f32.mrb[0].mxu0
    %1689 = vdwg.mxu0
    %v1690 = vadd.f32 %v1596, %v1599
    %v1691 = vadd.f32 %v1690, %v1604
    %v1692 = vadd.f32 %v1691, %v1607
    %v1693 = vrot.slane %v1692, 4
    %v1694 = vadd.f32 %v1692, %v1693
    %v1695 = vrot.slane %v1694, 2
    %v1696 = vadd.f32 %v1694, %v1695
    %v1697 = vrot.slane %v1696, 1
    %v1698 = vadd.f32 %v1696, %v1697
    %v1699 = vadd.f32 %v1612, %v1615
    %v1700 = vadd.f32 %v1699, %v1620
    %v1701 = vadd.f32 %v1700, %v1623
    %v1702 = vrot.slane %v1701, 4
    %v1703 = vadd.f32 %v1701, %v1702
    %v1704 = vrot.slane %v1703, 2
    %v1705 = vadd.f32 %v1703, %v1704
    %v1706 = vrot.slane %v1705, 1
    %v1707 = vadd.f32 %v1705, %v1706
    %v1708 = vadd.f32 %v1628, %v1631
    %v1709 = vadd.f32 %v1708, %v1636
    %v1710 = vadd.f32 %v1709, %v1639
    %v1711 = vrot.slane %v1710, 4
    %v1712 = vadd.f32 %v1710, %v1711
    %v1713 = vrot.slane %v1712, 2
    %v1714 = vadd.f32 %v1712, %v1713
    %v1715 = vrot.slane %v1714, 1
    %v1716 = vadd.f32 %v1714, %v1715
    %v1717 = vadd.f32 %v1644, %v1647
    %v1718 = vadd.f32 %v1717, %v1652
    %v1719 = vadd.f32 %v1718, %v1655
    %v1720 = vrot.slane %v1719, 4
    %v1721 = vadd.f32 %v1719, %v1720
    %v1722 = vrot.slane %v1721, 2
    %v1723 = vadd.f32 %v1721, %v1722
    %v1724 = vrot.slane %v1723, 1
    %v1725 = vadd.f32 %v1723, %v1724
    %v1726 = vadd.f32 %v1660, %v1663
    %v1727 = vadd.f32 %v1726, %v1668
    %v1728 = vadd.f32 %v1727, %v1671
    %v1729 = vrot.slane %v1728, 4
    %v1730 = vadd.f32 %v1728, %v1729
    %v1731 = vrot.slane %v1730, 2
    %v1732 = vadd.f32 %v1730, %v1731
    %v1733 = vrot.slane %v1732, 1
    %v1734 = vadd.f32 %v1732, %v1733
    %v1735 = vadd.f32 %v1676, %v1679
    %v1736 = vadd.f32 %v1735, %v1684
    %v1737 = vadd.f32 %v1736, %v1687
    %v1738 = vrot.slane %v1737, 4
    %v1739 = vadd.f32 %v1737, %v1738
    %v1740 = vrot.slane %v1739, 2
    %v1741 = vadd.f32 %v1739, %v1740
    %v1742 = vrot.slane %v1741, 1
    %v1743 = vadd.f32 %v1741, %v1742
    %v1744 = vmul.f32 %v1698, %v845
    %v1745 = vmul.f32 %v1707, %v845
    %v1746 = vmul.f32 %v1716, %v845
    %v1747 = vmul.f32 %v1725, %v845
    %v1748 = vmul.f32 %v1734, %v845
    %v1749 = vmul.f32 %v1743, %v845
    %v1750 = vsub.f32 %v1596, %v1744
    %v1751 = vsub.f32 %v1599, %v1744
    %v1752 = vsub.f32 %v1604, %v1744
    %v1753 = vsub.f32 %v1607, %v1744
    %v1754 = vsub.f32 %v1612, %v1745
    %v1755 = vsub.f32 %v1615, %v1745
    %v1756 = vsub.f32 %v1620, %v1745
    %v1757 = vsub.f32 %v1623, %v1745
    %v1758 = vsub.f32 %v1628, %v1746
    %v1759 = vsub.f32 %v1631, %v1746
    %v1760 = vsub.f32 %v1636, %v1746
    %v1761 = vsub.f32 %v1639, %v1746
    %v1762 = vsub.f32 %v1644, %v1747
    %v1763 = vsub.f32 %v1647, %v1747
    %v1764 = vsub.f32 %v1652, %v1747
    %v1765 = vsub.f32 %v1655, %v1747
    %v1766 = vsub.f32 %v1660, %v1748
    %v1767 = vsub.f32 %v1663, %v1748
    %v1768 = vsub.f32 %v1668, %v1748
    %v1769 = vsub.f32 %v1671, %v1748
    %v1770 = vsub.f32 %v1676, %v1749
    %v1771 = vsub.f32 %v1679, %v1749
    %v1772 = vsub.f32 %v1684, %v1749
    %v1773 = vsub.f32 %v1687, %v1749
    %v1774 = vmul.f32 %v1750, %v1750
    %v1775 = vmul.f32 %v1751, %v1751
    %v1776 = vmul.f32 %v1752, %v1752
    %v1777 = vmul.f32 %v1753, %v1753
    %v1778 = vmul.f32 %v1754, %v1754
    %v1779 = vmul.f32 %v1755, %v1755
    %v1780 = vmul.f32 %v1756, %v1756
    %v1781 = vmul.f32 %v1757, %v1757
    %v1782 = vmul.f32 %v1758, %v1758
    %v1783 = vmul.f32 %v1759, %v1759
    %v1784 = vmul.f32 %v1760, %v1760
    %v1785 = vmul.f32 %v1761, %v1761
    %v1786 = vmul.f32 %v1762, %v1762
    %v1787 = vmul.f32 %v1763, %v1763
    %v1788 = vmul.f32 %v1764, %v1764
    %v1789 = vmul.f32 %v1765, %v1765
    %v1790 = vmul.f32 %v1766, %v1766
    %v1791 = vmul.f32 %v1767, %v1767
    %v1792 = vmul.f32 %v1768, %v1768
    %v1793 = vmul.f32 %v1769, %v1769
    %v1794 = vmul.f32 %v1770, %v1770
    %v1795 = vmul.f32 %v1771, %v1771
    %v1796 = vmul.f32 %v1772, %v1772
    %v1797 = vmul.f32 %v1773, %v1773
    %v1798 = vadd.f32 %v1774, %v1775
    %v1799 = vadd.f32 %v1798, %v1776
    %v1800 = vadd.f32 %v1799, %v1777
    %v1801 = vrot.slane %v1800, 4
    %v1802 = vadd.f32 %v1800, %v1801
    %v1803 = vrot.slane %v1802, 2
    %v1804 = vadd.f32 %v1802, %v1803
    %v1805 = vrot.slane %v1804, 1
    %v1806 = vadd.f32 %v1804, %v1805
    %v1807 = vadd.f32 %v1778, %v1779
    %v1808 = vadd.f32 %v1807, %v1780
    %v1809 = vadd.f32 %v1808, %v1781
    %v1810 = vrot.slane %v1809, 4
    %v1811 = vadd.f32 %v1809, %v1810
    %v1812 = vrot.slane %v1811, 2
    %v1813 = vadd.f32 %v1811, %v1812
    %v1814 = vrot.slane %v1813, 1
    %v1815 = vadd.f32 %v1813, %v1814
    %v1816 = vadd.f32 %v1782, %v1783
    %v1817 = vadd.f32 %v1816, %v1784
    %v1818 = vadd.f32 %v1817, %v1785
    %v1819 = vrot.slane %v1818, 4
    %v1820 = vadd.f32 %v1818, %v1819
    %v1821 = vrot.slane %v1820, 2
    %v1822 = vadd.f32 %v1820, %v1821
    %v1823 = vrot.slane %v1822, 1
    %v1824 = vadd.f32 %v1822, %v1823
    %v1825 = vadd.f32 %v1786, %v1787
    %v1826 = vadd.f32 %v1825, %v1788
    %v1827 = vadd.f32 %v1826, %v1789
    %v1828 = vrot.slane %v1827, 4
    %v1829 = vadd.f32 %v1827, %v1828
    %v1830 = vrot.slane %v1829, 2
    %v1831 = vadd.f32 %v1829, %v1830
    %v1832 = vrot.slane %v1831, 1
    %v1833 = vadd.f32 %v1831, %v1832
    %v1834 = vadd.f32 %v1790, %v1791
    %v1835 = vadd.f32 %v1834, %v1792
    %v1836 = vadd.f32 %v1835, %v1793
    %v1837 = vrot.slane %v1836, 4
    %v1838 = vadd.f32 %v1836, %v1837
    %v1839 = vrot.slane %v1838, 2
    %v1840 = vadd.f32 %v1838, %v1839
    %v1841 = vrot.slane %v1840, 1
    %v1842 = vadd.f32 %v1840, %v1841
    %v1843 = vadd.f32 %v1794, %v1795
    %v1844 = vadd.f32 %v1843, %v1796
    %v1845 = vadd.f32 %v1844, %v1797
    %v1846 = vrot.slane %v1845, 4
    %v1847 = vadd.f32 %v1845, %v1846
    %v1848 = vrot.slane %v1847, 2
    %v1849 = vadd.f32 %v1847, %v1848
    %v1850 = vrot.slane %v1849, 1
    %v1851 = vadd.f32 %v1849, %v1850
    %v1852 = vmul.f32 %v1806, %v845
    %v1853 = vmul.f32 %v1815, %v845
    %v1854 = vmul.f32 %v1824, %v845
    %v1855 = vmul.f32 %v1833, %v845
    %v1856 = vmul.f32 %v1842, %v845
    %v1857 = vmul.f32 %v1851, %v845
    %v1858 = vadd.f32 %v1852, 1e-05
    %v1859 = vadd.f32 %v1853, 1e-05
    %v1860 = vadd.f32 %v1854, 1e-05
    %v1861 = vadd.f32 %v1855, 1e-05
    %v1862 = vadd.f32 %v1856, 1e-05
    %v1863 = vadd.f32 %v1857, 1e-05
    %v1864 = vrsqrt.pop %v1858
    %v1865 = vrsqrt.pop %v1859
    %v1866 = vrsqrt.pop %v1860
    %v1867 = vrsqrt.pop %v1861
    %v1868 = vrsqrt.pop %v1862
    %v1869 = vrsqrt.pop %v1863
    %v1870 = vmul.f32 %v1750, %v1864
    %v1871 = vmul.f32 %v1751, %v1864
    %v1872 = vmul.f32 %v1752, %v1864
    %v1873 = vmul.f32 %v1753, %v1864
    %v1874 = vmul.f32 %v1754, %v1865
    %v1875 = vmul.f32 %v1755, %v1865
    %v1876 = vmul.f32 %v1756, %v1865
    %v1877 = vmul.f32 %v1757, %v1865
    %v1878 = vmul.f32 %v1758, %v1866
    %v1879 = vmul.f32 %v1759, %v1866
    %v1880 = vmul.f32 %v1760, %v1866
    %v1881 = vmul.f32 %v1761, %v1866
    %v1882 = vmul.f32 %v1762, %v1867
    %v1883 = vmul.f32 %v1763, %v1867
    %v1884 = vmul.f32 %v1764, %v1867
    %v1885 = vmul.f32 %v1765, %v1867
    %v1886 = vmul.f32 %v1766, %v1868
    %v1887 = vmul.f32 %v1767, %v1868
    %v1888 = vmul.f32 %v1768, %v1868
    %v1889 = vmul.f32 %v1769, %v1868
    %v1890 = vmul.f32 %v1770, %v1869
    %v1891 = vmul.f32 %v1771, %v1869
    %v1892 = vmul.f32 %v1772, %v1869
    %v1893 = vmul.f32 %v1773, %v1869
    %s1894 = scalar_lea.vmem %s4, 192
    %v1895 = vld [vmem:[%s1894] sm:$0xff]
    %v1896 = vld [vmem:[%s1894 + $0x8] sm:$0xff]
    %v1897 = vld [vmem:[%s1894 + $0x10] sm:$0xff]
    %v1898 = vld [vmem:[%s1894 + $0x18] sm:$0xff]
    %v1899 = vld [vmem:[%s1894 + $0x20] sm:$0xff]
    %v1900 = vld [vmem:[%s1894 + $0x28] sm:$0xff]
    %v1901 = vld [vmem:[%s1894 + $0x30] sm:$0xff]
    %v1902 = vld [vmem:[%s1894 + $0x38] sm:$0xff]
    %v1903 = vld [vmem:[%s1894 + $0x40] sm:$0xff]
    %v1904 = vld [vmem:[%s1894 + $0x48] sm:$0xff]
    %v1905 = vld [vmem:[%s1894 + $0x50] sm:$0xff]
    %v1906 = vld [vmem:[%s1894 + $0x58] sm:$0xff]
    %v1907 = vld [vmem:[%s1894 + $0x60] sm:$0xff]
    %v1908 = vld [vmem:[%s1894 + $0x68] sm:$0xff]
    %v1909 = vld [vmem:[%s1894 + $0x70] sm:$0xff]
    %v1910 = vld [vmem:[%s1894 + $0x78] sm:$0xff]
    %v1911 = vld [vmem:[%s1894 + $0x80] sm:$0xff]
    %v1912 = vld [vmem:[%s1894 + $0x88] sm:$0xff]
    %v1913 = vld [vmem:[%s1894 + $0x90] sm:$0xff]
    %v1914 = vld [vmem:[%s1894 + $0x98] sm:$0xff]
    %v1915 = vld [vmem:[%s1894 + $0xa0] sm:$0xff]
    %v1916 = vld [vmem:[%s1894 + $0xa8] sm:$0xff]
    %v1917 = vld [vmem:[%s1894 + $0xb0] sm:$0xff]
    %v1918 = vld [vmem:[%s1894 + $0xb8] sm:$0xff]
    %1920 = vset.pattern.permute.xlu0 0
    %1921 = vperm.xlu0 %1920, %v1895
    %v1922 = vpop.permute.xlu0 %1921
    %1925 = vset.pattern.permute.xlu0 0
    %1926 = vperm.xlu0 %1925, %v1896
    %v1927 = vpop.permute.xlu0 %1926
    %1930 = vset.pattern.permute.xlu0 0
    %1931 = vperm.xlu0 %1930, %v1897
    %v1932 = vpop.permute.xlu0 %1931
    %1935 = vset.pattern.permute.xlu0 0
    %1936 = vperm.xlu0 %1935, %v1898
    %v1937 = vpop.permute.xlu0 %1936
    %1940 = vset.pattern.permute.xlu0 0
    %1941 = vperm.xlu0 %1940, %v1899
    %v1942 = vpop.permute.xlu0 %1941
    %1945 = vset.pattern.permute.xlu0 0
    %1946 = vperm.xlu0 %1945, %v1900
    %v1947 = vpop.permute.xlu0 %1946
    %1950 = vset.pattern.permute.xlu0 0
    %1951 = vperm.xlu0 %1950, %v1901
    %v1952 = vpop.permute.xlu0 %1951
    %1955 = vset.pattern.permute.xlu0 0
    %1956 = vperm.xlu0 %1955, %v1902
    %v1957 = vpop.permute.xlu0 %1956
    %1960 = vset.pattern.permute.xlu0 0
    %1961 = vperm.xlu0 %1960, %v1903
    %v1962 = vpop.permute.xlu0 %1961
    %1965 = vset.pattern.permute.xlu0 0
    %1966 = vperm.xlu0 %1965, %v1904
    %v1967 = vpop.permute.xlu0 %1966
    %1970 = vset.pattern.permute.xlu0 0
    %1971 = vperm.xlu0 %1970, %v1905
    %v1972 = vpop.permute.xlu0 %1971
    %1975 = vset.pattern.permute.xlu0 0
    %1976 = vperm.xlu0 %1975, %v1906
    %v1977 = vpop.permute.xlu0 %1976
    %1980 = vset.pattern.permute.xlu0 0
    %1981 = vperm.xlu0 %1980, %v1907
    %v1982 = vpop.permute.xlu0 %1981
    %1985 = vset.pattern.permute.xlu0 0
    %1986 = vperm.xlu0 %1985, %v1908
    %v1987 = vpop.permute.xlu0 %1986
    %1990 = vset.pattern.permute.xlu0 0
    %1991 = vperm.xlu0 %1990, %v1909
    %v1992 = vpop.permute.xlu0 %1991
    %1995 = vset.pattern.permute.xlu0 0
    %1996 = vperm.xlu0 %1995, %v1910
    %v1997 = vpop.permute.xlu0 %1996
    %2000 = vset.pattern.permute.xlu0 0
    %2001 = vperm.xlu0 %2000, %v1911
    %v2002 = vpop.permute.xlu0 %2001
    %2005 = vset.pattern.permute.xlu0 0
    %2006 = vperm.xlu0 %2005, %v1912
    %v2007 = vpop.permute.xlu0 %2006
    %2010 = vset.pattern.permute.xlu0 0
    %2011 = vperm.xlu0 %2010, %v1913
    %v2012 = vpop.permute.xlu0 %2011
    %2015 = vset.pattern.permute.xlu0 0
    %2016 = vperm.xlu0 %2015, %v1914
    %v2017 = vpop.permute.xlu0 %2016
    %2020 = vset.pattern.permute.xlu0 0
    %2021 = vperm.xlu0 %2020, %v1915
    %v2022 = vpop.permute.xlu0 %2021
    %2025 = vset.pattern.permute.xlu0 0
    %2026 = vperm.xlu0 %2025, %v1916
    %v2027 = vpop.permute.xlu0 %2026
    %2030 = vset.pattern.permute.xlu0 0
    %2031 = vperm.xlu0 %2030, %v1917
    %v2032 = vpop.permute.xlu0 %2031
    %2035 = vset.pattern.permute.xlu0 0
    %2036 = vperm.xlu0 %2035, %v1918
    %v2037 = vpop.permute.xlu0 %2036
    %v2039 = vmul.f32 %v1870, %v1922
    %v2040 = vmul.f32 %v1871, %v1927
    %v2041 = vmul.f32 %v1872, %v1932
    %v2042 = vmul.f32 %v1873, %v1937
    %v2043 = vmul.f32 %v1874, %v1942
    %v2044 = vmul.f32 %v1875, %v1947
    %v2045 = vmul.f32 %v1876, %v1952
    %v2046 = vmul.f32 %v1877, %v1957
    %v2047 = vmul.f32 %v1878, %v1962
    %v2048 = vmul.f32 %v1879, %v1967
    %v2049 = vmul.f32 %v1880, %v1972
    %v2050 = vmul.f32 %v1881, %v1977
    %v2051 = vmul.f32 %v1882, %v1982
    %v2052 = vmul.f32 %v1883, %v1987
    %v2053 = vmul.f32 %v1884, %v1992
    %v2054 = vmul.f32 %v1885, %v1997
    %v2055 = vmul.f32 %v1886, %v2002
    %v2056 = vmul.f32 %v1887, %v2007
    %v2057 = vmul.f32 %v1888, %v2012
    %v2058 = vmul.f32 %v1889, %v2017
    %v2059 = vmul.f32 %v1890, %v2022
    %v2060 = vmul.f32 %v1891, %v2027
    %v2061 = vmul.f32 %v1892, %v2032
    %v2062 = vmul.f32 %v1893, %v2037
    %s2063 = scalar_lea.vmem %s5, 192
    %v2064 = vld [vmem:[%s2063] sm:$0xff]
    %v2065 = vld [vmem:[%s2063 + $0x8] sm:$0xff]
    %v2066 = vld [vmem:[%s2063 + $0x10] sm:$0xff]
    %v2067 = vld [vmem:[%s2063 + $0x18] sm:$0xff]
    %v2068 = vld [vmem:[%s2063 + $0x20] sm:$0xff]
    %v2069 = vld [vmem:[%s2063 + $0x28] sm:$0xff]
    %v2070 = vld [vmem:[%s2063 + $0x30] sm:$0xff]
    %v2071 = vld [vmem:[%s2063 + $0x38] sm:$0xff]
    %v2072 = vld [vmem:[%s2063 + $0x40] sm:$0xff]
    %v2073 = vld [vmem:[%s2063 + $0x48] sm:$0xff]
    %v2074 = vld [vmem:[%s2063 + $0x50] sm:$0xff]
    %v2075 = vld [vmem:[%s2063 + $0x58] sm:$0xff]
    %v2076 = vld [vmem:[%s2063 + $0x60] sm:$0xff]
    %v2077 = vld [vmem:[%s2063 + $0x68] sm:$0xff]
    %v2078 = vld [vmem:[%s2063 + $0x70] sm:$0xff]
    %v2079 = vld [vmem:[%s2063 + $0x78] sm:$0xff]
    %v2080 = vld [vmem:[%s2063 + $0x80] sm:$0xff]
    %v2081 = vld [vmem:[%s2063 + $0x88] sm:$0xff]
    %v2082 = vld [vmem:[%s2063 + $0x90] sm:$0xff]
    %v2083 = vld [vmem:[%s2063 + $0x98] sm:$0xff]
    %v2084 = vld [vmem:[%s2063 + $0xa0] sm:$0xff]
    %v2085 = vld [vmem:[%s2063 + $0xa8] sm:$0xff]
    %v2086 = vld [vmem:[%s2063 + $0xb0] sm:$0xff]
    %v2087 = vld [vmem:[%s2063 + $0xb8] sm:$0xff]
    %2089 = vset.pattern.permute.xlu0 0
    %2090 = vperm.xlu0 %2089, %v2064
    %v2091 = vpop.permute.xlu0 %2090
    %2094 = vset.pattern.permute.xlu0 0
    %2095 = vperm.xlu0 %2094, %v2065
    %v2096 = vpop.permute.xlu0 %2095
    %2099 = vset.pattern.permute.xlu0 0
    %2100 = vperm.xlu0 %2099, %v2066
    %v2101 = vpop.permute.xlu0 %2100
    %2104 = vset.pattern.permute.xlu0 0
    %2105 = vperm.xlu0 %2104, %v2067
    %v2106 = vpop.permute.xlu0 %2105
    %2109 = vset.pattern.permute.xlu0 0
    %2110 = vperm.xlu0 %2109, %v2068
    %v2111 = vpop.permute.xlu0 %2110
    %2114 = vset.pattern.permute.xlu0 0
    %2115 = vperm.xlu0 %2114, %v2069
    %v2116 = vpop.permute.xlu0 %2115
    %2119 = vset.pattern.permute.xlu0 0
    %2120 = vperm.xlu0 %2119, %v2070
    %v2121 = vpop.permute.xlu0 %2120
    %2124 = vset.pattern.permute.xlu0 0
    %2125 = vperm.xlu0 %2124, %v2071
    %v2126 = vpop.permute.xlu0 %2125
    %2129 = vset.pattern.permute.xlu0 0
    %2130 = vperm.xlu0 %2129, %v2072
    %v2131 = vpop.permute.xlu0 %2130
    %2134 = vset.pattern.permute.xlu0 0
    %2135 = vperm.xlu0 %2134, %v2073
    %v2136 = vpop.permute.xlu0 %2135
    %2139 = vset.pattern.permute.xlu0 0
    %2140 = vperm.xlu0 %2139, %v2074
    %v2141 = vpop.permute.xlu0 %2140
    %2144 = vset.pattern.permute.xlu0 0
    %2145 = vperm.xlu0 %2144, %v2075
    %v2146 = vpop.permute.xlu0 %2145
    %2149 = vset.pattern.permute.xlu0 0
    %2150 = vperm.xlu0 %2149, %v2076
    %v2151 = vpop.permute.xlu0 %2150
    %2154 = vset.pattern.permute.xlu0 0
    %2155 = vperm.xlu0 %2154, %v2077
    %v2156 = vpop.permute.xlu0 %2155
    %2159 = vset.pattern.permute.xlu0 0
    %2160 = vperm.xlu0 %2159, %v2078
    %v2161 = vpop.permute.xlu0 %2160
    %2164 = vset.pattern.permute.xlu0 0
    %2165 = vperm.xlu0 %2164, %v2079
    %v2166 = vpop.permute.xlu0 %2165
    %2169 = vset.pattern.permute.xlu0 0
    %2170 = vperm.xlu0 %2169, %v2080
    %v2171 = vpop.permute.xlu0 %2170
    %2174 = vset.pattern.permute.xlu0 0
    %2175 = vperm.xlu0 %2174, %v2081
    %v2176 = vpop.permute.xlu0 %2175
    %2179 = vset.pattern.permute.xlu0 0
    %2180 = vperm.xlu0 %2179, %v2082
    %v2181 = vpop.permute.xlu0 %2180
    %2184 = vset.pattern.permute.xlu0 0
    %2185 = vperm.xlu0 %2184, %v2083
    %v2186 = vpop.permute.xlu0 %2185
    %2189 = vset.pattern.permute.xlu0 0
    %2190 = vperm.xlu0 %2189, %v2084
    %v2191 = vpop.permute.xlu0 %2190
    %2194 = vset.pattern.permute.xlu0 0
    %2195 = vperm.xlu0 %2194, %v2085
    %v2196 = vpop.permute.xlu0 %2195
    %2199 = vset.pattern.permute.xlu0 0
    %2200 = vperm.xlu0 %2199, %v2086
    %v2201 = vpop.permute.xlu0 %2200
    %2204 = vset.pattern.permute.xlu0 0
    %2205 = vperm.xlu0 %2204, %v2087
    %v2206 = vpop.permute.xlu0 %2205
    %v2208 = vadd.f32 %v2039, %v2091
    %v2209 = vadd.f32 %v2040, %v2096
    %v2210 = vadd.f32 %v2041, %v2101
    %v2211 = vadd.f32 %v2042, %v2106
    %v2212 = vadd.f32 %v2043, %v2111
    %v2213 = vadd.f32 %v2044, %v2116
    %v2214 = vadd.f32 %v2045, %v2121
    %v2215 = vadd.f32 %v2046, %v2126
    %v2216 = vadd.f32 %v2047, %v2131
    %v2217 = vadd.f32 %v2048, %v2136
    %v2218 = vadd.f32 %v2049, %v2141
    %v2219 = vadd.f32 %v2050, %v2146
    %v2220 = vadd.f32 %v2051, %v2151
    %v2221 = vadd.f32 %v2052, %v2156
    %v2222 = vadd.f32 %v2053, %v2161
    %v2223 = vadd.f32 %v2054, %v2166
    %v2224 = vadd.f32 %v2055, %v2171
    %v2225 = vadd.f32 %v2056, %v2176
    %v2226 = vadd.f32 %v2057, %v2181
    %v2227 = vadd.f32 %v2058, %v2186
    %v2228 = vadd.f32 %v2059, %v2191
    %v2229 = vadd.f32 %v2060, %v2196
    %v2230 = vadd.f32 %v2061, %v2201
    %v2231 = vadd.f32 %v2062, %v2206
    %v2232 = vmax.f32 %v2208, 0.0
    %v2233 = vmax.f32 %v2209, 0.0
    %v2234 = vmax.f32 %v2210, 0.0
    %v2235 = vmax.f32 %v2211, 0.0
    %v2236 = vmax.f32 %v2212, 0.0
    %v2237 = vmax.f32 %v2213, 0.0
    %v2238 = vmax.f32 %v2214, 0.0
    %v2239 = vmax.f32 %v2215, 0.0
    %v2240 = vmax.f32 %v2216, 0.0
    %v2241 = vmax.f32 %v2217, 0.0
    %v2242 = vmax.f32 %v2218, 0.0
    %v2243 = vmax.f32 %v2219, 0.0
    %v2244 = vmax.f32 %v2220, 0.0
    %v2245 = vmax.f32 %v2221, 0.0
    %v2246 = vmax.f32 %v2222, 0.0
    %v2247 = vmax.f32 %v2223, 0.0
    %v2248 = vmax.f32 %v2224, 0.0
    %v2249 = vmax.f32 %v2225, 0.0
    %v2250 = vmax.f32 %v2226, 0.0
    %v2251 = vmax.f32 %v2227, 0.0
    %v2252 = vmax.f32 %v2228, 0.0
    %v2253 = vmax.f32 %v2229, 0.0
    %v2254 = vmax.f32 %v2230, 0.0
    %v2255 = vmax.f32 %v2231, 0.0
    %v2256 = vadd.f32 %v1356, %v2232
    %v2257 = vadd.f32 %v1357, %v2233
    %v2258 = vadd.f32 %v1358, %v2234
    %v2259 = vadd.f32 %v1359, %v2235
    %v2260 = vadd.f32 %v1360, %v2236
    %v2261 = vadd.f32 %v1361, %v2237
    %v2262 = vadd.f32 %v1362, %v2238
    %v2263 = vadd.f32 %v1363, %v2239
    %v2264 = vadd.f32 %v1364, %v2240
    %v2265 = vadd.f32 %v1365, %v2241
    %v2266 = vadd.f32 %v1366, %v2242
    %v2267 = vadd.f32 %v1367, %v2243
    %v2268 = vadd.f32 %v1368, %v2244
    %v2269 = vadd.f32 %v1369, %v2245
    %v2270 = vadd.f32 %v1370, %v2246
    %v2271 = vadd.f32 %v1371, %v2247
    %v2272 = vadd.f32 %v1372, %v2248
    %v2273 = vadd.f32 %v1373, %v2249
    %v2274 = vadd.f32 %v1374, %v2250
    %v2275 = vadd.f32 %v1375, %v2251
    %v2276 = vadd.f32 %v1376, %v2252
    %v2277 = vadd.f32 %v1377, %v2253
    %v2278 = vadd.f32 %v1378, %v2254
    %v2279 = vadd.f32 %v1379, %v2255
    %2280 = vst [vmem:[#allocation2] sm:$0xff] %v2256
    %2281 = vst [vmem:[#allocation2 + $0x8] sm:$0xff] %v2257
    %2282 = vst [vmem:[#allocation2 + $0x10] sm:$0xff] %v2258
    %2283 = vst [vmem:[#allocation2 + $0x18] sm:$0xff] %v2259
    %2284 = vst [vmem:[#allocation2 + $0x20] sm:$0xff] %v2260
    %2285 = vst [vmem:[#allocation2 + $0x28] sm:$0xff] %v2261
    %2286 = vst [vmem:[#allocation2 + $0x30] sm:$0xff] %v2262
    %2287 = vst [vmem:[#allocation2 + $0x38] sm:$0xff] %v2263
    %2288 = vst [vmem:[#allocation2 + $0x40] sm:$0xff] %v2264
    %2289 = vst [vmem:[#allocation2 + $0x48] sm:$0xff] %v2265
    %2290 = vst [vmem:[#allocation2 + $0x50] sm:$0xff] %v2266
    %2291 = vst [vmem:[#allocation2 + $0x58] sm:$0xff] %v2267
    %2292 = vst [vmem:[#allocation2 + $0x60] sm:$0xff] %v2268
    %2293 = vst [vmem:[#allocation2 + $0x68] sm:$0xff] %v2269
    %2294 = vst [vmem:[#allocation2 + $0x70] sm:$0xff] %v2270
    %2295 = vst [vmem:[#allocation2 + $0x78] sm:$0xff] %v2271
    %2296 = vst [vmem:[#allocation2 + $0x80] sm:$0xff] %v2272
    %2297 = vst [vmem:[#allocation2 + $0x88] sm:$0xff] %v2273
    %2298 = vst [vmem:[#allocation2 + $0x90] sm:$0xff] %v2274
    %2299 = vst [vmem:[#allocation2 + $0x98] sm:$0xff] %v2275
    %2300 = vst [vmem:[#allocation2 + $0xa0] sm:$0xff] %v2276
    %2301 = vst [vmem:[#allocation2 + $0xa8] sm:$0xff] %v2277
    %2302 = vst [vmem:[#allocation2 + $0xb0] sm:$0xff] %v2278
    %2303 = vst [vmem:[#allocation2 + $0xb8] sm:$0xff] %v2279
    // Predicated region
    $region26: #{tpu_custom_call.1} parent=1 // pred_check
      _
    $region27: #{tpu_custom_call.1} parent=1 // pred_check_branch
      %2305 = sbr.rel (0) target = $region29
    $region28: #{tpu_custom_call.1} parent=1 // pred_region
      %s2307 = ssub.s32 3072, 3072
      %2308 = vsyncadd [#allocation3], %s2307
      %s2309 = sshll.u32 [#allocation2], 4
      %s2310 = int_to_ptr.vmem [resolvable:$true] %s2309
      %2315 = dma.vmem_to_hbm [thread:$0]  %s2310, 3072, %s6, [#allocation3], 128, 128, 8
    $region29: #{tpu_custom_call.1} parent=1 // pred_fallthru
      _
    // Predicated region
    $region30: #{tpu_custom_call.1} parent=1 // pred_check
      _
    $region31: #{tpu_custom_call.1} parent=1 // pred_check_branch
      %2317 = sbr.rel (0) target = $region33
    $region32: #{tpu_custom_call.1} parent=1 // pred_region
      %2318 = dma.done [#allocation3], 3072
    $region33: #{tpu_custom_call.1} parent=1 // pred_fallthru
      _
    %2319 = vsyncpa [#allocation3], 1

</llo_original>
